<compile_context>
chip_gen: v7x
topology: tpu7x:2x2x1
jax: 0.10.0
libtpu: 0.0.40
codegen_flags: <defaults>
</compile_context>

<pallas_src>
import math

import numpy as np

import jax
import jax.numpy as jnp
from jax.experimental import pallas as pl
from jax.experimental.pallas import tpu as pltpu

_LANES = 128


def _round_up(x, m):
    return (x + m - 1) // m * m


class _Packer:
    """Packs many small 2-D host arrays into one (rows, width) buffer.

    Row offsets are aligned to `align` sublanes so every in-kernel static
    slice starts on a native tile boundary; width is padded to a lane multiple
    at finalize time."""

    def __init__(self, align):
        self._arrs = []
        self._pad_rows = []
        self._offset = 0
        self._max_cols = 0
        self._align = align

    def add(self, arr):
        arr = np.asarray(arr, np.float32)
        assert arr.ndim == 2
        rp = _round_up(arr.shape[0], self._align)
        off = self._offset
        self._arrs.append(arr)
        self._pad_rows.append(rp)
        self._offset += rp
        self._max_cols = max(self._max_cols, arr.shape[1])
        return off

    def finalize(self, dtype, min_width=1):
        width = max(min_width, self._max_cols)
        if width > 1:
            width = _round_up(width, _LANES)
        rows = max(self._align, self._offset)
        buf = np.zeros((rows, width), np.float32)
        r = 0
        for arr, rp in zip(self._arrs, self._pad_rows):
            buf[r:r + arr.shape[0], :arr.shape[1]] = arr
            r += rp
        return jnp.asarray(buf, dtype=dtype)


# ----------------------------------------------------------------------------
# Fused kernel (whole network, one grid step == one lane-packed sample group)
# ----------------------------------------------------------------------------
def _build_kernel(plan, G):
    def im2col(v, lin, lout, k, off):
        """v: (cin, G*lin) fp32 -> (k*cin, G*lout) fp32 im2col columns.
        Crop offset `off` is folded into the per-sample slice starts."""
        if k == 1 and off == 0 and lout == lin:
            return v
        blocks = []
        for kk in range(k):
            segs = [v[:, s * lin + off + kk: s * lin + off + kk + lout]
                    for s in range(G)]
            blocks.append(segs[0] if G == 1 else jnp.concatenate(segs, axis=1))
        return blocks[0] if k == 1 else jnp.concatenate(blocks, axis=0)

    def kernel(x_ref, w_ref, b_ref, o_ref):
        def wslice(off, rows, cols):                 # bf16 weight/constant view
            return w_ref[off:off + rows, :cols]

        def bias(off, rows):                         # (rows, 1) fp32
            return b_ref[off:off + rows, :]

        cur = x_ref[...]                             # (Cin, G*L) fp32
        skips = []

        for op in plan:
            kind = op["kind"]
            if kind == "save_skip":
                skips.append(cur)

            elif kind == "conv":
                cout, lout = op["cout"], op["lout"]
                acc = jnp.zeros((cout, G * lout), jnp.float32)
                for part in op["parts"]:             # 1 part (plain conv) or
                    src, sidx = part["src"]          # 2 parts (decoder concat)
                    v = cur if src == "x" else skips[sidx]
                    cols = im2col(v, part["lin"], lout, part["k"],
                                  part["off"]).astype(jnp.bfloat16)
                    w = wslice(part["woff"], cout, part["wcols"])
                    acc = acc + jnp.dot(w, cols,
                                        preferred_element_type=jnp.float32)
                acc = acc + bias(op["boff"], cout)   # fp32 bias add
                cur = jnp.maximum(acc, 0.0) if op["relu"] else acc

            elif kind == "pool":
                # One fused select matmul -> [even | odd] lane halves -> max.
                glp = G * op["lp"]
                sel = wslice(op["soff"], op["srows"], op["scols"])
                y = jnp.dot(cur.astype(jnp.bfloat16), sel,
                            preferred_element_type=jnp.float32)
                cur = jnp.maximum(y[:, :glp], y[:, glp:])

            elif kind == "upsample":
                # ConvTranspose1d(k=2, s=2): stacked-weight matmul + scatter.
                cout, cin, lin = op["cout"], op["cin"], op["lin"]
                ws = wslice(op["wsoff"], 2 * cout, cin)
                y = jnp.dot(ws, cur.astype(jnp.bfloat16),
                            preferred_element_type=jnp.float32)   # (2Cout,G*Lin)
                yy = jnp.concatenate([y[:cout], y[cout:]], axis=1)
                pscat = wslice(op["poff"], op["prows"], op["pcols"])
                cur = (jnp.dot(yy.astype(jnp.bfloat16), pscat,
                               preferred_element_type=jnp.float32)
                       + bias(op["boff"], cout))

            else:
                raise ValueError(kind)

        o_ref[...] = cur.astype(o_ref.dtype)

    return kernel


# ----------------------------------------------------------------------------
# Host-side plan/packing + pallas_call wrapper
# ----------------------------------------------------------------------------
def build_unet1d(params, *, in_channels, length, batch, samples_per_step=None):
    """Returns (forward_fn, (wbuf, bbuf)).  forward_fn(wbuf, bbuf, x) is
    jittable; all layout prep / constant building happens here, once."""
    depth = len(params["encoder"])
    G = batch if samples_per_step is None else samples_per_step
    assert batch % G == 0, "samples_per_step must divide the batch"
    num_groups = batch // G

    wpk = _Packer(align=16)   # bf16 weights + 0/1 select/scatter constants
    bpk = _Packer(align=8)    # fp32 biases, stored as (Cout, 1) columns
    plan = []

    def add_bias(b):
        return bpk.add(np.asarray(b, np.float32).reshape(-1, 1))

    def add_single_conv(w, b, cin, lin, relu):
        w = np.asarray(w, np.float32)
        cout, wcin, k = w.shape
        assert wcin == cin
        lout = lin - k + 1
        assert lout >= 1, "input length too short for this depth"
        wim = np.transpose(w, (0, 2, 1)).reshape(cout, k * cin)   # (Cout, K*Cin)
        plan.append(dict(kind="conv", cout=cout, lout=lout, relu=relu,
                         boff=add_bias(b),
                         parts=[dict(src=("x", None), woff=wpk.add(wim),
                                     wcols=k * cin, k=k, lin=lin, off=0)]))
        return cout, lout

    L, C = length, in_channels
    skip_meta = []

    # ---- encoder: depth x [(conv3+ReLU) x2 -> save skip -> maxpool2] ----
    for (w1, b1), (w2, b2) in params["encoder"]:
        C, L = add_single_conv(w1, b1, C, L, relu=True)
        C, L = add_single_conv(w2, b2, C, L, relu=True)
        plan.append(dict(kind="save_skip"))
        skip_meta.append((C, L))
        lp = L // 2
        assert lp >= 1
        # Fused even/odd select matrix (block-diag per lane-packed sample).
        sel = np.zeros((G * L, 2 * G * lp), np.float32)
        for s in range(G):
            for j in range(lp):
                sel[s * L + 2 * j, s * lp + j] = 1.0
                sel[s * L + 2 * j + 1, G * lp + s * lp + j] = 1.0
        plan.append(dict(kind="pool", soff=wpk.add(sel),
                         srows=G * L, scols=2 * G * lp, lp=lp))
        L = lp

    # ---- bottom block ----
    (w1, b1), (w2, b2) = params["bottom"]
    C, L = add_single_conv(w1, b1, C, L, relu=True)
    C, L = add_single_conv(w2, b2, C, L, relu=True)

    # ---- decoder ----
    for blk, ((uw, ub), (c1w, c1b), (c2w, c2b)) in enumerate(params["decoder"]):
        uw = np.asarray(uw, np.float32)          # torch ConvTranspose1d: (Cin, Cout, 2)
        cin_u, cout_u, ku = uw.shape
        assert ku == 2 and cin_u == C
        wstack = np.concatenate([uw[:, :, 0].T, uw[:, :, 1].T], axis=0)  # (2Cout, Cin)
        lin, lup = L, 2 * L
        # Scatter matrix: [y0 | y1] lane blocks -> per-sample interleaved output.
        pscat = np.zeros((2 * G * lin, G * lup), np.float32)
        for s in range(G):
            for l in range(lin):
                pscat[s * lin + l, s * lup + 2 * l] = 1.0
                pscat[G * lin + s * lin + l, s * lup + 2 * l + 1] = 1.0
        plan.append(dict(kind="upsample", wsoff=wpk.add(wstack),
                         cin=cin_u, cout=cout_u, lin=lin,
                         poff=wpk.add(pscat), prows=2 * G * lin,
                         pcols=G * lup, boff=add_bias(ub)))
        C, L = cout_u, lup

        # conv1 on cat([cropped skip, upsampled x]) == split-weight accumulation.
        skip_idx = depth - 1 - blk
        cs, ls = skip_meta[skip_idx]
        crop = ls - L
        assert crop >= 0 and crop % 2 == 0, "center crop must be even"
        half = crop // 2
        c1w = np.asarray(c1w, np.float32)
        cout1, ctot, k1 = c1w.shape
        assert ctot == cs + C
        lout1 = L - k1 + 1
        parts = []
        for w_part, src, cin_p, lin_p, off_p in (
                (c1w[:, :cs, :], ("skip", skip_idx), cs, ls, half),
                (c1w[:, cs:, :], ("x", None), C, L, 0)):
            wim = np.transpose(w_part, (0, 2, 1)).reshape(cout1, k1 * cin_p)
            parts.append(dict(src=src, woff=wpk.add(wim), wcols=k1 * cin_p,
                              k=k1, lin=lin_p, off=off_p))
        plan.append(dict(kind="conv", cout=cout1, lout=lout1, relu=True,
                         boff=add_bias(c1b), parts=parts))
        C, L = cout1, lout1

        C, L = add_single_conv(c2w, c2b, C, L, relu=True)

    # TODO(synk): dropout / monte_carlo dropout layers omitted (p=0 -> identity).

    # ---- classifier: 1x1 conv, no activation ----
    cw, cb = params["classifier"]
    C, L = add_single_conv(cw, cb, C, L, relu=False)
    out_ch, out_len = C, L

    wbuf = wpk.finalize(jnp.bfloat16, min_width=_LANES)   # one bf16 slab
    bbuf = bpk.finalize(jnp.float32, min_width=1)          # one fp32 bias slab
    wrows, wwidth = wbuf.shape
    brows = bbuf.shape[0]

    kernel = _build_kernel(plan, G)

    call = pl.pallas_call(
        kernel,
        out_shape=jax.ShapeDtypeStruct((num_groups, out_ch, G * out_len),
                                       jnp.float32),
        grid=(num_groups,),
        in_specs=[
            pl.BlockSpec((None, in_channels, G * length), lambda g: (g, 0, 0)),
            pl.BlockSpec((wrows, wwidth), lambda g: (0, 0)),   # fetched once
            pl.BlockSpec((brows, 1), lambda g: (0, 0)),        # fetched once
        ],
        out_specs=pl.BlockSpec((None, out_ch, G * out_len), lambda g: (g, 0, 0)),
        compiler_params=pltpu.CompilerParams(
            dimension_semantics=("parallel",),     # groups split across TCs (v7x)
            vmem_limit_bytes=32 * 1024 * 1024,     # huge headroom (<1 MiB used)
        ),
    )

    def forward(wbuf, bbuf, x):
        n, cin, lx = x.shape
        assert (n, cin, lx) == (batch, in_channels, length)
        # Lane-pack G samples per grid step: (groups, Cin, G*L).
        xp = (x.reshape(num_groups, G, cin, lx)
                .transpose(0, 2, 1, 3)
                .reshape(num_groups, cin, G * lx))
        y = call(xp, wbuf, bbuf)
        # Unpack lane-dense output slab back to (N, Cout, Lout).
        y = (y.reshape(num_groups, out_ch, G, out_len)
               .transpose(0, 2, 1, 3)
               .reshape(n, out_ch, out_len))
        return y

    return forward, (wbuf, bbuf)


# ----------------------------------------------------------------------------
# Deterministic parameter init (PyTorch-like uniform), PyTorch layouts
# ----------------------------------------------------------------------------
def _make_conv(key, cin, cout, k):
    kw, kb = jax.random.split(key)
    bound = 1.0 / math.sqrt(cin * k)
    w = jax.random.uniform(kw, (cout, cin, k), jnp.float32, -bound, bound)
    b = jax.random.uniform(kb, (cout,), jnp.float32, -bound, bound)
    return w, b


def _make_convt(key, cin, cout, k):
    kw, kb = jax.random.split(key)
    bound = 1.0 / math.sqrt(cin * k)
    w = jax.random.uniform(kw, (cin, cout, k), jnp.float32, -bound, bound)
    b = jax.random.uniform(kb, (cout,), jnp.float32, -bound, bound)
    return w, b


def init_unet1d(key, in_channels=1, out_classes=2, num_encoding_blocks=3,
                out_channels_first_layer=8):
    depth = num_encoding_blocks - 1
    keys = iter(jax.random.split(key, 8 * num_encoding_blocks + 8))
    params = {}

    enc = []
    cin, cout = in_channels, out_channels_first_layer
    for _ in range(depth):
        c1 = _make_conv(next(keys), cin, cout, 3)
        c2 = _make_conv(next(keys), cout, cout, 3)
        enc.append((c1, c2))
        cin, cout = cout, cout * 2
    params["encoder"] = enc

    params["bottom"] = (
        _make_conv(next(keys), cin, 2 * cin, 3),
        _make_conv(next(keys), 2 * cin, 2 * cin, 3),
    )

    dec = []
    skip_ch = out_channels_first_layer * 2 ** (depth - 1)
    for _ in range(depth):
        up = _make_convt(next(keys), 2 * skip_ch, 2 * skip_ch, 2)
        c1 = _make_conv(next(keys), 3 * skip_ch, skip_ch, 3)
        c2 = _make_conv(next(keys), skip_ch, skip_ch, 3)
        dec.append((up, c1, c2))
        skip_ch //= 2
    params["decoder"] = dec

    params["classifier"] = _make_conv(next(keys), out_channels_first_layer,
                                      out_classes, 1)
    return params


if __name__ == "__main__":
    key = jax.random.PRNGKey(0)
    pkey, xkey = jax.random.split(key)

    params = init_unet1d(pkey, in_channels=1, out_classes=2,
                         num_encoding_blocks=3, out_channels_first_layer=8)

    batch, in_ch, length = 2, 1, 64
    # Default: whole batch lane-packed into a single grid step (best on the
    # single-TC v5e/v6e; pass samples_per_step=1 for a per-sample parallel
    # grid on v7x with larger batches).
    forward, (wbuf, bbuf) = build_unet1d(
        params, in_channels=in_ch, length=length, batch=batch,
        samples_per_step=None)
    wbuf, bbuf = jax.block_until_ready((wbuf, bbuf))

    # Input: (batch=2, channels=1, length=64) — NCL, like PyTorch Conv1d input.
    x = jax.random.normal(xkey, (batch, in_ch, length), jnp.float32)

    fwd = jax.jit(forward)
    out = jax.block_until_ready(fwd(wbuf, bbuf, x))

    assert out.shape == (2, 2, 24), out.shape
    assert bool(jnp.all(jnp.isfinite(out)))
    print("KERNEL_OK")
</pallas_src>

<mosaic_0001>
module attributes {stable_mosaic.version = 11 : i64} {
  func.func @kernel(%arg0: i32, %arg1: memref<1x1x128xf32, #tpu.memory_space<vmem>>, %arg2: memref<640x128xbf16, #tpu.memory_space<vmem>>, %arg3: memref<216x1xf32, #tpu.memory_space<vmem>>, %arg4: memref<1x2x48xf32, #tpu.memory_space<vmem>>) attributes {dimension_semantics = [#tpu.dimension_semantics<parallel>], iteration_bounds = array<i64: 1>, scalar_prefetch = 0 : i64, scratch_operands = 0 : i64, tpu.core_type = #tpu.core_type<tc>, window_params = [{transform_indices = @transform_0, window_bounds = array<i64: 1, 1, 128>}, {pipeline_mode = #tpu.pipeline_mode<synchronous>, transform_indices = @transform_1, window_bounds = array<i64: 640, 128>}, {pipeline_mode = #tpu.pipeline_mode<synchronous>, transform_indices = @transform_2, window_bounds = array<i64: 216, 1>}, {transform_indices = @transform_3, window_bounds = array<i64: 1, 2, 48>}]} {
    %c0 = arith.constant 0 : index
    %c0_0 = arith.constant 0 : index
    %c0_1 = arith.constant 0 : index
    %0 = vector.load %arg1[%c0, %c0_0, %c0_1] : memref<1x1x128xf32, #tpu.memory_space<vmem>>, vector<1x1x128xf32>
    %1 = vector.shape_cast %0 : vector<1x1x128xf32> to vector<1x128xf32>
    %cst = arith.constant 0.000000e+00 : f32
    %2 = vector.broadcast %cst : f32 to vector<8x124xf32>
    %3 = vector.extract_strided_slice %1 {offsets = [0, 0], sizes = [1, 62], strides = [1, 1]} : vector<1x128xf32> to vector<1x62xf32>
    %4 = vector.extract_strided_slice %1 {offsets = [0, 64], sizes = [1, 62], strides = [1, 1]} : vector<1x128xf32> to vector<1x62xf32>
    %5 = tpu.concatenate %3, %4 in 1 : vector<1x62xf32>, vector<1x62xf32> -> vector<1x124xf32>
    %6 = vector.extract_strided_slice %1 {offsets = [0, 1], sizes = [1, 62], strides = [1, 1]} : vector<1x128xf32> to vector<1x62xf32>
    %7 = vector.extract_strided_slice %1 {offsets = [0, 65], sizes = [1, 62], strides = [1, 1]} : vector<1x128xf32> to vector<1x62xf32>
    %8 = tpu.concatenate %6, %7 in 1 : vector<1x62xf32>, vector<1x62xf32> -> vector<1x124xf32>
    %9 = vector.extract_strided_slice %1 {offsets = [0, 2], sizes = [1, 62], strides = [1, 1]} : vector<1x128xf32> to vector<1x62xf32>
    %10 = vector.extract_strided_slice %1 {offsets = [0, 66], sizes = [1, 62], strides = [1, 1]} : vector<1x128xf32> to vector<1x62xf32>
    %11 = tpu.concatenate %9, %10 in 1 : vector<1x62xf32>, vector<1x62xf32> -> vector<1x124xf32>
    %12 = tpu.concatenate %5, %8, %11 in 0 : vector<1x124xf32>, vector<1x124xf32>, vector<1x124xf32> -> vector<3x124xf32>
    %13 = arith.truncf %12 : vector<3x124xf32> to vector<3x124xbf16>
    %c0_2 = arith.constant 0 : index
    %c0_3 = arith.constant 0 : index
    %14 = vector.load %arg2[%c0_2, %c0_3] : memref<640x128xbf16, #tpu.memory_space<vmem>>, vector<8x3xbf16>
    %cst_4 = arith.constant dense<0.000000e+00> : vector<8x124xf32>
    %15 = tpu.matmul %14, %13, %cst_4 {dimension_numbers = #tpu.dot_dimension_numbers<[1], [0], [0], [1], [0, 0, 1, 1], [], []>} : vector<8x3xbf16>, vector<3x124xbf16>, vector<8x124xf32> -> vector<8x124xf32>
    %16 = arith.addf %2, %15 : vector<8x124xf32>
    %c0_5 = arith.constant 0 : index
    %c0_6 = arith.constant 0 : index
    %17 = vector.load %arg3[%c0_5, %c0_6] : memref<216x1xf32, #tpu.memory_space<vmem>>, vector<8x1xf32>
    %18 = vector.broadcast %17 : vector<8x1xf32> to vector<8x124xf32>
    %19 = arith.addf %16, %18 : vector<8x124xf32>
    %cst_7 = arith.constant 0.000000e+00 : f32
    %20 = vector.broadcast %cst_7 : f32 to vector<8x124xf32>
    %21 = arith.maximumf %19, %20 : vector<8x124xf32>
    %cst_8 = arith.constant 0.000000e+00 : f32
    %22 = vector.broadcast %cst_8 : f32 to vector<8x120xf32>
    %23 = vector.extract_strided_slice %21 {offsets = [0, 0], sizes = [8, 60], strides = [1, 1]} : vector<8x124xf32> to vector<8x60xf32>
    %24 = vector.extract_strided_slice %21 {offsets = [0, 62], sizes = [8, 60], strides = [1, 1]} : vector<8x124xf32> to vector<8x60xf32>
    %25 = tpu.concatenate %23, %24 in 1 : vector<8x60xf32>, vector<8x60xf32> -> vector<8x120xf32>
    %26 = vector.extract_strided_slice %21 {offsets = [0, 1], sizes = [8, 60], strides = [1, 1]} : vector<8x124xf32> to vector<8x60xf32>
    %27 = vector.extract_strided_slice %21 {offsets = [0, 63], sizes = [8, 60], strides = [1, 1]} : vector<8x124xf32> to vector<8x60xf32>
    %28 = tpu.concatenate %26, %27 in 1 : vector<8x60xf32>, vector<8x60xf32> -> vector<8x120xf32>
    %29 = vector.extract_strided_slice %21 {offsets = [0, 2], sizes = [8, 60], strides = [1, 1]} : vector<8x124xf32> to vector<8x60xf32>
    %30 = vector.extract_strided_slice %21 {offsets = [0, 64], sizes = [8, 60], strides = [1, 1]} : vector<8x124xf32> to vector<8x60xf32>
    %31 = tpu.concatenate %29, %30 in 1 : vector<8x60xf32>, vector<8x60xf32> -> vector<8x120xf32>
    %32 = tpu.concatenate %25, %28, %31 in 0 : vector<8x120xf32>, vector<8x120xf32>, vector<8x120xf32> -> vector<24x120xf32>
    %33 = arith.truncf %32 : vector<24x120xf32> to vector<24x120xbf16>
    %c16 = arith.constant 16 : index
    %c0_9 = arith.constant 0 : index
    %34 = vector.load %arg2[%c16, %c0_9] : memref<640x128xbf16, #tpu.memory_space<vmem>>, vector<8x24xbf16>
    %cst_10 = arith.constant dense<0.000000e+00> : vector<8x120xf32>
    %35 = tpu.matmul %34, %33, %cst_10 {dimension_numbers = #tpu.dot_dimension_numbers<[1], [0], [0], [1], [0, 0, 1, 1], [], []>} : vector<8x24xbf16>, vector<24x120xbf16>, vector<8x120xf32> -> vector<8x120xf32>
    %36 = arith.addf %22, %35 : vector<8x120xf32>
    %c8 = arith.constant 8 : index
    %c0_11 = arith.constant 0 : index
    %37 = vector.load %arg3[%c8, %c0_11] : memref<216x1xf32, #tpu.memory_space<vmem>>, vector<8x1xf32>
    %38 = vector.broadcast %37 : vector<8x1xf32> to vector<8x120xf32>
    %39 = arith.addf %36, %38 : vector<8x120xf32>
    %cst_12 = arith.constant 0.000000e+00 : f32
    %40 = vector.broadcast %cst_12 : f32 to vector<8x120xf32>
    %41 = arith.maximumf %39, %40 : vector<8x120xf32>
    %c32 = arith.constant 32 : index
    %c0_13 = arith.constant 0 : index
    %42 = vector.load %arg2[%c32, %c0_13] : memref<640x128xbf16, #tpu.memory_space<vmem>>, vector<120x120xbf16>
    %43 = arith.truncf %41 : vector<8x120xf32> to vector<8x120xbf16>
    %cst_14 = arith.constant dense<0.000000e+00> : vector<8x120xf32>
    %44 = tpu.matmul %43, %42, %cst_14 {dimension_numbers = #tpu.dot_dimension_numbers<[1], [0], [0], [1], [0, 0, 1, 1], [], []>} : vector<8x120xbf16>, vector<120x120xbf16>, vector<8x120xf32> -> vector<8x120xf32>
    %45 = vector.extract_strided_slice %44 {offsets = [0, 0], sizes = [8, 60], strides = [1, 1]} : vector<8x120xf32> to vector<8x60xf32>
    %46 = vector.extract_strided_slice %44 {offsets = [0, 60], sizes = [8, 60], strides = [1, 1]} : vector<8x120xf32> to vector<8x60xf32>
    %47 = arith.maximumf %45, %46 : vector<8x60xf32>
    %cst_15 = arith.constant 0.000000e+00 : f32
    %48 = vector.broadcast %cst_15 : f32 to vector<16x56xf32>
    %49 = vector.extract_strided_slice %47 {offsets = [0, 0], sizes = [8, 28], strides = [1, 1]} : vector<8x60xf32> to vector<8x28xf32>
    %50 = vector.extract_strided_slice %47 {offsets = [0, 30], sizes = [8, 28], strides = [1, 1]} : vector<8x60xf32> to vector<8x28xf32>
    %51 = tpu.concatenate %49, %50 in 1 : vector<8x28xf32>, vector<8x28xf32> -> vector<8x56xf32>
    %52 = vector.extract_strided_slice %47 {offsets = [0, 1], sizes = [8, 28], strides = [1, 1]} : vector<8x60xf32> to vector<8x28xf32>
    %53 = vector.extract_strided_slice %47 {offsets = [0, 31], sizes = [8, 28], strides = [1, 1]} : vector<8x60xf32> to vector<8x28xf32>
    %54 = tpu.concatenate %52, %53 in 1 : vector<8x28xf32>, vector<8x28xf32> -> vector<8x56xf32>
    %55 = vector.extract_strided_slice %47 {offsets = [0, 2], sizes = [8, 28], strides = [1, 1]} : vector<8x60xf32> to vector<8x28xf32>
    %56 = vector.extract_strided_slice %47 {offsets = [0, 32], sizes = [8, 28], strides = [1, 1]} : vector<8x60xf32> to vector<8x28xf32>
    %57 = tpu.concatenate %55, %56 in 1 : vector<8x28xf32>, vector<8x28xf32> -> vector<8x56xf32>
    %58 = tpu.concatenate %51, %54, %57 in 0 : vector<8x56xf32>, vector<8x56xf32>, vector<8x56xf32> -> vector<24x56xf32>
    %59 = arith.truncf %58 : vector<24x56xf32> to vector<24x56xbf16>
    %c160 = arith.constant 160 : index
    %c0_16 = arith.constant 0 : index
    %60 = vector.load %arg2[%c160, %c0_16] : memref<640x128xbf16, #tpu.memory_space<vmem>>, vector<16x24xbf16>
    %cst_17 = arith.constant dense<0.000000e+00> : vector<16x56xf32>
    %61 = tpu.matmul %60, %59, %cst_17 {dimension_numbers = #tpu.dot_dimension_numbers<[1], [0], [0], [1], [0, 0, 1, 1], [], []>} : vector<16x24xbf16>, vector<24x56xbf16>, vector<16x56xf32> -> vector<16x56xf32>
    %62 = arith.addf %48, %61 : vector<16x56xf32>
    %c16_18 = arith.constant 16 : index
    %c0_19 = arith.constant 0 : index
    %63 = vector.load %arg3[%c16_18, %c0_19] : memref<216x1xf32, #tpu.memory_space<vmem>>, vector<16x1xf32>
    %64 = vector.broadcast %63 : vector<16x1xf32> to vector<16x56xf32>
    %65 = arith.addf %62, %64 : vector<16x56xf32>
    %cst_20 = arith.constant 0.000000e+00 : f32
    %66 = vector.broadcast %cst_20 : f32 to vector<16x56xf32>
    %67 = arith.maximumf %65, %66 : vector<16x56xf32>
    %cst_21 = arith.constant 0.000000e+00 : f32
    %68 = vector.broadcast %cst_21 : f32 to vector<16x52xf32>
    %69 = vector.extract_strided_slice %67 {offsets = [0, 0], sizes = [16, 26], strides = [1, 1]} : vector<16x56xf32> to vector<16x26xf32>
    %70 = vector.extract_strided_slice %67 {offsets = [0, 28], sizes = [16, 26], strides = [1, 1]} : vector<16x56xf32> to vector<16x26xf32>
    %71 = tpu.concatenate %69, %70 in 1 : vector<16x26xf32>, vector<16x26xf32> -> vector<16x52xf32>
    %72 = vector.extract_strided_slice %67 {offsets = [0, 1], sizes = [16, 26], strides = [1, 1]} : vector<16x56xf32> to vector<16x26xf32>
    %73 = vector.extract_strided_slice %67 {offsets = [0, 29], sizes = [16, 26], strides = [1, 1]} : vector<16x56xf32> to vector<16x26xf32>
    %74 = tpu.concatenate %72, %73 in 1 : vector<16x26xf32>, vector<16x26xf32> -> vector<16x52xf32>
    %75 = vector.extract_strided_slice %67 {offsets = [0, 2], sizes = [16, 26], strides = [1, 1]} : vector<16x56xf32> to vector<16x26xf32>
    %76 = vector.extract_strided_slice %67 {offsets = [0, 30], sizes = [16, 26], strides = [1, 1]} : vector<16x56xf32> to vector<16x26xf32>
    %77 = tpu.concatenate %75, %76 in 1 : vector<16x26xf32>, vector<16x26xf32> -> vector<16x52xf32>
    %78 = tpu.concatenate %71, %74, %77 in 0 : vector<16x52xf32>, vector<16x52xf32>, vector<16x52xf32> -> vector<48x52xf32>
    %79 = arith.truncf %78 : vector<48x52xf32> to vector<48x52xbf16>
    %c176 = arith.constant 176 : index
    %c0_22 = arith.constant 0 : index
    %80 = vector.load %arg2[%c176, %c0_22] : memref<640x128xbf16, #tpu.memory_space<vmem>>, vector<16x48xbf16>
    %cst_23 = arith.constant dense<0.000000e+00> : vector<16x52xf32>
    %81 = tpu.matmul %80, %79, %cst_23 {dimension_numbers = #tpu.dot_dimension_numbers<[1], [0], [0], [1], [0, 0, 1, 1], [], []>} : vector<16x48xbf16>, vector<48x52xbf16>, vector<16x52xf32> -> vector<16x52xf32>
    %82 = arith.addf %68, %81 : vector<16x52xf32>
    %c32_24 = arith.constant 32 : index
    %c0_25 = arith.constant 0 : index
    %83 = vector.load %arg3[%c32_24, %c0_25] : memref<216x1xf32, #tpu.memory_space<vmem>>, vector<16x1xf32>
    %84 = vector.broadcast %83 : vector<16x1xf32> to vector<16x52xf32>
    %85 = arith.addf %82, %84 : vector<16x52xf32>
    %cst_26 = arith.constant 0.000000e+00 : f32
    %86 = vector.broadcast %cst_26 : f32 to vector<16x52xf32>
    %87 = arith.maximumf %85, %86 : vector<16x52xf32>
    %c192 = arith.constant 192 : index
    %c0_27 = arith.constant 0 : index
    %88 = vector.load %arg2[%c192, %c0_27] : memref<640x128xbf16, #tpu.memory_space<vmem>>, vector<52x52xbf16>
    %89 = arith.truncf %87 : vector<16x52xf32> to vector<16x52xbf16>
    %cst_28 = arith.constant dense<0.000000e+00> : vector<16x52xf32>
    %90 = tpu.matmul %89, %88, %cst_28 {dimension_numbers = #tpu.dot_dimension_numbers<[1], [0], [0], [1], [0, 0, 1, 1], [], []>} : vector<16x52xbf16>, vector<52x52xbf16>, vector<16x52xf32> -> vector<16x52xf32>
    %91 = vector.extract_strided_slice %90 {offsets = [0, 0], sizes = [16, 26], strides = [1, 1]} : vector<16x52xf32> to vector<16x26xf32>
    %92 = vector.extract_strided_slice %90 {offsets = [0, 26], sizes = [16, 26], strides = [1, 1]} : vector<16x52xf32> to vector<16x26xf32>
    %93 = arith.maximumf %91, %92 : vector<16x26xf32>
    %cst_29 = arith.constant 0.000000e+00 : f32
    %94 = vector.broadcast %cst_29 : f32 to vector<32x22xf32>
    %95 = vector.extract_strided_slice %93 {offsets = [0, 0], sizes = [16, 11], strides = [1, 1]} : vector<16x26xf32> to vector<16x11xf32>
    %96 = vector.extract_strided_slice %93 {offsets = [0, 13], sizes = [16, 11], strides = [1, 1]} : vector<16x26xf32> to vector<16x11xf32>
    %97 = tpu.concatenate %95, %96 in 1 : vector<16x11xf32>, vector<16x11xf32> -> vector<16x22xf32>
    %98 = vector.extract_strided_slice %93 {offsets = [0, 1], sizes = [16, 11], strides = [1, 1]} : vector<16x26xf32> to vector<16x11xf32>
    %99 = vector.extract_strided_slice %93 {offsets = [0, 14], sizes = [16, 11], strides = [1, 1]} : vector<16x26xf32> to vector<16x11xf32>
    %100 = tpu.concatenate %98, %99 in 1 : vector<16x11xf32>, vector<16x11xf32> -> vector<16x22xf32>
    %101 = vector.extract_strided_slice %93 {offsets = [0, 2], sizes = [16, 11], strides = [1, 1]} : vector<16x26xf32> to vector<16x11xf32>
    %102 = vector.extract_strided_slice %93 {offsets = [0, 15], sizes = [16, 11], strides = [1, 1]} : vector<16x26xf32> to vector<16x11xf32>
    %103 = tpu.concatenate %101, %102 in 1 : vector<16x11xf32>, vector<16x11xf32> -> vector<16x22xf32>
    %104 = tpu.concatenate %97, %100, %103 in 0 : vector<16x22xf32>, vector<16x22xf32>, vector<16x22xf32> -> vector<48x22xf32>
    %105 = arith.truncf %104 : vector<48x22xf32> to vector<48x22xbf16>
    %c256 = arith.constant 256 : index
    %c0_30 = arith.constant 0 : index
    %106 = vector.load %arg2[%c256, %c0_30] : memref<640x128xbf16, #tpu.memory_space<vmem>>, vector<32x48xbf16>
    %cst_31 = arith.constant dense<0.000000e+00> : vector<32x22xf32>
    %107 = tpu.matmul %106, %105, %cst_31 {dimension_numbers = #tpu.dot_dimension_numbers<[1], [0], [0], [1], [0, 0, 1, 1], [], []>} : vector<32x48xbf16>, vector<48x22xbf16>, vector<32x22xf32> -> vector<32x22xf32>
    %108 = arith.addf %94, %107 : vector<32x22xf32>
    %c48 = arith.constant 48 : index
    %c0_32 = arith.constant 0 : index
    %109 = vector.load %arg3[%c48, %c0_32] : memref<216x1xf32, #tpu.memory_space<vmem>>, vector<32x1xf32>
    %110 = vector.broadcast %109 : vector<32x1xf32> to vector<32x22xf32>
    %111 = arith.addf %108, %110 : vector<32x22xf32>
    %cst_33 = arith.constant 0.000000e+00 : f32
    %112 = vector.broadcast %cst_33 : f32 to vector<32x22xf32>
    %113 = arith.maximumf %111, %112 : vector<32x22xf32>
    %cst_34 = arith.constant 0.000000e+00 : f32
    %114 = vector.broadcast %cst_34 : f32 to vector<32x18xf32>
    %115 = vector.extract_strided_slice %113 {offsets = [0, 0], sizes = [32, 9], strides = [1, 1]} : vector<32x22xf32> to vector<32x9xf32>
    %116 = vector.extract_strided_slice %113 {offsets = [0, 11], sizes = [32, 9], strides = [1, 1]} : vector<32x22xf32> to vector<32x9xf32>
    %117 = tpu.concatenate %115, %116 in 1 : vector<32x9xf32>, vector<32x9xf32> -> vector<32x18xf32>
    %118 = vector.extract_strided_slice %113 {offsets = [0, 1], sizes = [32, 9], strides = [1, 1]} : vector<32x22xf32> to vector<32x9xf32>
    %119 = vector.extract_strided_slice %113 {offsets = [0, 12], sizes = [32, 9], strides = [1, 1]} : vector<32x22xf32> to vector<32x9xf32>
    %120 = tpu.concatenate %118, %119 in 1 : vector<32x9xf32>, vector<32x9xf32> -> vector<32x18xf32>
    %121 = vector.extract_strided_slice %113 {offsets = [0, 2], sizes = [32, 9], strides = [1, 1]} : vector<32x22xf32> to vector<32x9xf32>
    %122 = vector.extract_strided_slice %113 {offsets = [0, 13], sizes = [32, 9], strides = [1, 1]} : vector<32x22xf32> to vector<32x9xf32>
    %123 = tpu.concatenate %121, %122 in 1 : vector<32x9xf32>, vector<32x9xf32> -> vector<32x18xf32>
    %124 = tpu.concatenate %117, %120, %123 in 0 : vector<32x18xf32>, vector<32x18xf32>, vector<32x18xf32> -> vector<96x18xf32>
    %125 = arith.truncf %124 : vector<96x18xf32> to vector<96x18xbf16>
    %c288 = arith.constant 288 : index
    %c0_35 = arith.constant 0 : index
    %126 = vector.load %arg2[%c288, %c0_35] : memref<640x128xbf16, #tpu.memory_space<vmem>>, vector<32x96xbf16>
    %cst_36 = arith.constant dense<0.000000e+00> : vector<32x18xf32>
    %127 = tpu.matmul %126, %125, %cst_36 {dimension_numbers = #tpu.dot_dimension_numbers<[1], [0], [0], [1], [0, 0, 1, 1], [], []>} : vector<32x96xbf16>, vector<96x18xbf16>, vector<32x18xf32> -> vector<32x18xf32>
    %128 = arith.addf %114, %127 : vector<32x18xf32>
    %c80 = arith.constant 80 : index
    %c0_37 = arith.constant 0 : index
    %129 = vector.load %arg3[%c80, %c0_37] : memref<216x1xf32, #tpu.memory_space<vmem>>, vector<32x1xf32>
    %130 = vector.broadcast %129 : vector<32x1xf32> to vector<32x18xf32>
    %131 = arith.addf %128, %130 : vector<32x18xf32>
    %cst_38 = arith.constant 0.000000e+00 : f32
    %132 = vector.broadcast %cst_38 : f32 to vector<32x18xf32>
    %133 = arith.maximumf %131, %132 : vector<32x18xf32>
    %c320 = arith.constant 320 : index
    %c0_39 = arith.constant 0 : index
    %134 = vector.load %arg2[%c320, %c0_39] : memref<640x128xbf16, #tpu.memory_space<vmem>>, vector<64x32xbf16>
    %135 = arith.truncf %133 : vector<32x18xf32> to vector<32x18xbf16>
    %cst_40 = arith.constant dense<0.000000e+00> : vector<64x18xf32>
    %136 = tpu.matmul %134, %135, %cst_40 {dimension_numbers = #tpu.dot_dimension_numbers<[1], [0], [0], [1], [0, 0, 1, 1], [], []>} : vector<64x32xbf16>, vector<32x18xbf16>, vector<64x18xf32> -> vector<64x18xf32>
    %137 = vector.extract_strided_slice %136 {offsets = [0, 0], sizes = [32, 18], strides = [1, 1]} : vector<64x18xf32> to vector<32x18xf32>
    %138 = vector.extract_strided_slice %136 {offsets = [32, 0], sizes = [32, 18], strides = [1, 1]} : vector<64x18xf32> to vector<32x18xf32>
    %139 = tpu.concatenate %137, %138 in 1 : vector<32x18xf32>, vector<32x18xf32> -> vector<32x36xf32>
    %c384 = arith.constant 384 : index
    %c0_41 = arith.constant 0 : index
    %140 = vector.load %arg2[%c384, %c0_41] : memref<640x128xbf16, #tpu.memory_space<vmem>>, vector<36x36xbf16>
    %141 = arith.truncf %139 : vector<32x36xf32> to vector<32x36xbf16>
    %cst_42 = arith.constant dense<0.000000e+00> : vector<32x36xf32>
    %142 = tpu.matmul %141, %140, %cst_42 {dimension_numbers = #tpu.dot_dimension_numbers<[1], [0], [0], [1], [0, 0, 1, 1], [], []>} : vector<32x36xbf16>, vector<36x36xbf16>, vector<32x36xf32> -> vector<32x36xf32>
    %c112 = arith.constant 112 : index
    %c0_43 = arith.constant 0 : index
    %143 = vector.load %arg3[%c112, %c0_43] : memref<216x1xf32, #tpu.memory_space<vmem>>, vector<32x1xf32>
    %144 = vector.broadcast %143 : vector<32x1xf32> to vector<32x36xf32>
    %145 = arith.addf %142, %144 : vector<32x36xf32>
    %cst_44 = arith.constant 0.000000e+00 : f32
    %146 = vector.broadcast %cst_44 : f32 to vector<16x32xf32>
    %147 = vector.extract_strided_slice %87 {offsets = [0, 4], sizes = [16, 16], strides = [1, 1]} : vector<16x52xf32> to vector<16x16xf32>
    %148 = vector.extract_strided_slice %87 {offsets = [0, 30], sizes = [16, 16], strides = [1, 1]} : vector<16x52xf32> to vector<16x16xf32>
    %149 = tpu.concatenate %147, %148 in 1 : vector<16x16xf32>, vector<16x16xf32> -> vector<16x32xf32>
    %150 = vector.extract_strided_slice %87 {offsets = [0, 5], sizes = [16, 16], strides = [1, 1]} : vector<16x52xf32> to vector<16x16xf32>
    %151 = vector.extract_strided_slice %87 {offsets = [0, 31], sizes = [16, 16], strides = [1, 1]} : vector<16x52xf32> to vector<16x16xf32>
    %152 = tpu.concatenate %150, %151 in 1 : vector<16x16xf32>, vector<16x16xf32> -> vector<16x32xf32>
    %153 = vector.extract_strided_slice %87 {offsets = [0, 6], sizes = [16, 16], strides = [1, 1]} : vector<16x52xf32> to vector<16x16xf32>
    %154 = vector.extract_strided_slice %87 {offsets = [0, 32], sizes = [16, 16], strides = [1, 1]} : vector<16x52xf32> to vector<16x16xf32>
    %155 = tpu.concatenate %153, %154 in 1 : vector<16x16xf32>, vector<16x16xf32> -> vector<16x32xf32>
    %156 = tpu.concatenate %149, %152, %155 in 0 : vector<16x32xf32>, vector<16x32xf32>, vector<16x32xf32> -> vector<48x32xf32>
    %157 = arith.truncf %156 : vector<48x32xf32> to vector<48x32xbf16>
    %c432 = arith.constant 432 : index
    %c0_45 = arith.constant 0 : index
    %158 = vector.load %arg2[%c432, %c0_45] : memref<640x128xbf16, #tpu.memory_space<vmem>>, vector<16x48xbf16>
    %cst_46 = arith.constant dense<0.000000e+00> : vector<16x32xf32>
    %159 = tpu.matmul %158, %157, %cst_46 {dimension_numbers = #tpu.dot_dimension_numbers<[1], [0], [0], [1], [0, 0, 1, 1], [], []>} : vector<16x48xbf16>, vector<48x32xbf16>, vector<16x32xf32> -> vector<16x32xf32>
    %160 = arith.addf %146, %159 : vector<16x32xf32>
    %161 = vector.extract_strided_slice %145 {offsets = [0, 0], sizes = [32, 16], strides = [1, 1]} : vector<32x36xf32> to vector<32x16xf32>
    %162 = vector.extract_strided_slice %145 {offsets = [0, 18], sizes = [32, 16], strides = [1, 1]} : vector<32x36xf32> to vector<32x16xf32>
    %163 = tpu.concatenate %161, %162 in 1 : vector<32x16xf32>, vector<32x16xf32> -> vector<32x32xf32>
    %164 = vector.extract_strided_slice %145 {offsets = [0, 1], sizes = [32, 16], strides = [1, 1]} : vector<32x36xf32> to vector<32x16xf32>
    %165 = vector.extract_strided_slice %145 {offsets = [0, 19], sizes = [32, 16], strides = [1, 1]} : vector<32x36xf32> to vector<32x16xf32>
    %166 = tpu.concatenate %164, %165 in 1 : vector<32x16xf32>, vector<32x16xf32> -> vector<32x32xf32>
    %167 = vector.extract_strided_slice %145 {offsets = [0, 2], sizes = [32, 16], strides = [1, 1]} : vector<32x36xf32> to vector<32x16xf32>
    %168 = vector.extract_strided_slice %145 {offsets = [0, 20], sizes = [32, 16], strides = [1, 1]} : vector<32x36xf32> to vector<32x16xf32>
    %169 = tpu.concatenate %167, %168 in 1 : vector<32x16xf32>, vector<32x16xf32> -> vector<32x32xf32>
    %170 = tpu.concatenate %163, %166, %169 in 0 : vector<32x32xf32>, vector<32x32xf32>, vector<32x32xf32> -> vector<96x32xf32>
    %171 = arith.truncf %170 : vector<96x32xf32> to vector<96x32xbf16>
    %c448 = arith.constant 448 : index
    %c0_47 = arith.constant 0 : index
    %172 = vector.load %arg2[%c448, %c0_47] : memref<640x128xbf16, #tpu.memory_space<vmem>>, vector<16x96xbf16>
    %cst_48 = arith.constant dense<0.000000e+00> : vector<16x32xf32>
    %173 = tpu.matmul %172, %171, %cst_48 {dimension_numbers = #tpu.dot_dimension_numbers<[1], [0], [0], [1], [0, 0, 1, 1], [], []>} : vector<16x96xbf16>, vector<96x32xbf16>, vector<16x32xf32> -> vector<16x32xf32>
    %174 = arith.addf %160, %173 : vector<16x32xf32>
    %c144 = arith.constant 144 : index
    %c0_49 = arith.constant 0 : index
    %175 = vector.load %arg3[%c144, %c0_49] : memref<216x1xf32, #tpu.memory_space<vmem>>, vector<16x1xf32>
    %176 = vector.broadcast %175 : vector<16x1xf32> to vector<16x32xf32>
    %177 = arith.addf %174, %176 : vector<16x32xf32>
    %cst_50 = arith.constant 0.000000e+00 : f32
    %178 = vector.broadcast %cst_50 : f32 to vector<16x32xf32>
    %179 = arith.maximumf %177, %178 : vector<16x32xf32>
    %cst_51 = arith.constant 0.000000e+00 : f32
    %180 = vector.broadcast %cst_51 : f32 to vector<16x28xf32>
    %181 = vector.extract_strided_slice %179 {offsets = [0, 0], sizes = [16, 14], strides = [1, 1]} : vector<16x32xf32> to vector<16x14xf32>
    %182 = vector.extract_strided_slice %179 {offsets = [0, 16], sizes = [16, 14], strides = [1, 1]} : vector<16x32xf32> to vector<16x14xf32>
    %183 = tpu.concatenate %181, %182 in 1 : vector<16x14xf32>, vector<16x14xf32> -> vector<16x28xf32>
    %184 = vector.extract_strided_slice %179 {offsets = [0, 1], sizes = [16, 14], strides = [1, 1]} : vector<16x32xf32> to vector<16x14xf32>
    %185 = vector.extract_strided_slice %179 {offsets = [0, 17], sizes = [16, 14], strides = [1, 1]} : vector<16x32xf32> to vector<16x14xf32>
    %186 = tpu.concatenate %184, %185 in 1 : vector<16x14xf32>, vector<16x14xf32> -> vector<16x28xf32>
    %187 = vector.extract_strided_slice %179 {offsets = [0, 2], sizes = [16, 14], strides = [1, 1]} : vector<16x32xf32> to vector<16x14xf32>
    %188 = vector.extract_strided_slice %179 {offsets = [0, 18], sizes = [16, 14], strides = [1, 1]} : vector<16x32xf32> to vector<16x14xf32>
    %189 = tpu.concatenate %187, %188 in 1 : vector<16x14xf32>, vector<16x14xf32> -> vector<16x28xf32>
    %190 = tpu.concatenate %183, %186, %189 in 0 : vector<16x28xf32>, vector<16x28xf32>, vector<16x28xf32> -> vector<48x28xf32>
    %191 = arith.truncf %190 : vector<48x28xf32> to vector<48x28xbf16>
    %c464 = arith.constant 464 : index
    %c0_52 = arith.constant 0 : index
    %192 = vector.load %arg2[%c464, %c0_52] : memref<640x128xbf16, #tpu.memory_space<vmem>>, vector<16x48xbf16>
    %cst_53 = arith.constant dense<0.000000e+00> : vector<16x28xf32>
    %193 = tpu.matmul %192, %191, %cst_53 {dimension_numbers = #tpu.dot_dimension_numbers<[1], [0], [0], [1], [0, 0, 1, 1], [], []>} : vector<16x48xbf16>, vector<48x28xbf16>, vector<16x28xf32> -> vector<16x28xf32>
    %194 = arith.addf %180, %193 : vector<16x28xf32>
    %c160_54 = arith.constant 160 : index
    %c0_55 = arith.constant 0 : index
    %195 = vector.load %arg3[%c160_54, %c0_55] : memref<216x1xf32, #tpu.memory_space<vmem>>, vector<16x1xf32>
    %196 = vector.broadcast %195 : vector<16x1xf32> to vector<16x28xf32>
    %197 = arith.addf %194, %196 : vector<16x28xf32>
    %cst_56 = arith.constant 0.000000e+00 : f32
    %198 = vector.broadcast %cst_56 : f32 to vector<16x28xf32>
    %199 = arith.maximumf %197, %198 : vector<16x28xf32>
    %c480 = arith.constant 480 : index
    %c0_57 = arith.constant 0 : index
    %200 = vector.load %arg2[%c480, %c0_57] : memref<640x128xbf16, #tpu.memory_space<vmem>>, vector<32x16xbf16>
    %201 = arith.truncf %199 : vector<16x28xf32> to vector<16x28xbf16>
    %cst_58 = arith.constant dense<0.000000e+00> : vector<32x28xf32>
    %202 = tpu.matmul %200, %201, %cst_58 {dimension_numbers = #tpu.dot_dimension_numbers<[1], [0], [0], [1], [0, 0, 1, 1], [], []>} : vector<32x16xbf16>, vector<16x28xbf16>, vector<32x28xf32> -> vector<32x28xf32>
    %203 = vector.extract_strided_slice %202 {offsets = [0, 0], sizes = [16, 28], strides = [1, 1]} : vector<32x28xf32> to vector<16x28xf32>
    %204 = vector.extract_strided_slice %202 {offsets = [16, 0], sizes = [16, 28], strides = [1, 1]} : vector<32x28xf32> to vector<16x28xf32>
    %205 = tpu.concatenate %203, %204 in 1 : vector<16x28xf32>, vector<16x28xf32> -> vector<16x56xf32>
    %c512 = arith.constant 512 : index
    %c0_59 = arith.constant 0 : index
    %206 = vector.load %arg2[%c512, %c0_59] : memref<640x128xbf16, #tpu.memory_space<vmem>>, vector<56x56xbf16>
    %207 = arith.truncf %205 : vector<16x56xf32> to vector<16x56xbf16>
    %cst_60 = arith.constant dense<0.000000e+00> : vector<16x56xf32>
    %208 = tpu.matmul %207, %206, %cst_60 {dimension_numbers = #tpu.dot_dimension_numbers<[1], [0], [0], [1], [0, 0, 1, 1], [], []>} : vector<16x56xbf16>, vector<56x56xbf16>, vector<16x56xf32> -> vector<16x56xf32>
    %c176_61 = arith.constant 176 : index
    %c0_62 = arith.constant 0 : index
    %209 = vector.load %arg3[%c176_61, %c0_62] : memref<216x1xf32, #tpu.memory_space<vmem>>, vector<16x1xf32>
    %210 = vector.broadcast %209 : vector<16x1xf32> to vector<16x56xf32>
    %211 = arith.addf %208, %210 : vector<16x56xf32>
    %cst_63 = arith.constant 0.000000e+00 : f32
    %212 = vector.broadcast %cst_63 : f32 to vector<8x52xf32>
    %213 = vector.extract_strided_slice %41 {offsets = [0, 16], sizes = [8, 26], strides = [1, 1]} : vector<8x120xf32> to vector<8x26xf32>
    %214 = vector.extract_strided_slice %41 {offsets = [0, 76], sizes = [8, 26], strides = [1, 1]} : vector<8x120xf32> to vector<8x26xf32>
    %215 = tpu.concatenate %213, %214 in 1 : vector<8x26xf32>, vector<8x26xf32> -> vector<8x52xf32>
    %216 = vector.extract_strided_slice %41 {offsets = [0, 17], sizes = [8, 26], strides = [1, 1]} : vector<8x120xf32> to vector<8x26xf32>
    %217 = vector.extract_strided_slice %41 {offsets = [0, 77], sizes = [8, 26], strides = [1, 1]} : vector<8x120xf32> to vector<8x26xf32>
    %218 = tpu.concatenate %216, %217 in 1 : vector<8x26xf32>, vector<8x26xf32> -> vector<8x52xf32>
    %219 = vector.extract_strided_slice %41 {offsets = [0, 18], sizes = [8, 26], strides = [1, 1]} : vector<8x120xf32> to vector<8x26xf32>
    %220 = vector.extract_strided_slice %41 {offsets = [0, 78], sizes = [8, 26], strides = [1, 1]} : vector<8x120xf32> to vector<8x26xf32>
    %221 = tpu.concatenate %219, %220 in 1 : vector<8x26xf32>, vector<8x26xf32> -> vector<8x52xf32>
    %222 = tpu.concatenate %215, %218, %221 in 0 : vector<8x52xf32>, vector<8x52xf32>, vector<8x52xf32> -> vector<24x52xf32>
    %223 = arith.truncf %222 : vector<24x52xf32> to vector<24x52xbf16>
    %c576 = arith.constant 576 : index
    %c0_64 = arith.constant 0 : index
    %224 = vector.load %arg2[%c576, %c0_64] : memref<640x128xbf16, #tpu.memory_space<vmem>>, vector<8x24xbf16>
    %cst_65 = arith.constant dense<0.000000e+00> : vector<8x52xf32>
    %225 = tpu.matmul %224, %223, %cst_65 {dimension_numbers = #tpu.dot_dimension_numbers<[1], [0], [0], [1], [0, 0, 1, 1], [], []>} : vector<8x24xbf16>, vector<24x52xbf16>, vector<8x52xf32> -> vector<8x52xf32>
    %226 = arith.addf %212, %225 : vector<8x52xf32>
    %227 = vector.extract_strided_slice %211 {offsets = [0, 0], sizes = [16, 26], strides = [1, 1]} : vector<16x56xf32> to vector<16x26xf32>
    %228 = vector.extract_strided_slice %211 {offsets = [0, 28], sizes = [16, 26], strides = [1, 1]} : vector<16x56xf32> to vector<16x26xf32>
    %229 = tpu.concatenate %227, %228 in 1 : vector<16x26xf32>, vector<16x26xf32> -> vector<16x52xf32>
    %230 = vector.extract_strided_slice %211 {offsets = [0, 1], sizes = [16, 26], strides = [1, 1]} : vector<16x56xf32> to vector<16x26xf32>
    %231 = vector.extract_strided_slice %211 {offsets = [0, 29], sizes = [16, 26], strides = [1, 1]} : vector<16x56xf32> to vector<16x26xf32>
    %232 = tpu.concatenate %230, %231 in 1 : vector<16x26xf32>, vector<16x26xf32> -> vector<16x52xf32>
    %233 = vector.extract_strided_slice %211 {offsets = [0, 2], sizes = [16, 26], strides = [1, 1]} : vector<16x56xf32> to vector<16x26xf32>
    %234 = vector.extract_strided_slice %211 {offsets = [0, 30], sizes = [16, 26], strides = [1, 1]} : vector<16x56xf32> to vector<16x26xf32>
    %235 = tpu.concatenate %233, %234 in 1 : vector<16x26xf32>, vector<16x26xf32> -> vector<16x52xf32>
    %236 = tpu.concatenate %229, %232, %235 in 0 : vector<16x52xf32>, vector<16x52xf32>, vector<16x52xf32> -> vector<48x52xf32>
    %237 = arith.truncf %236 : vector<48x52xf32> to vector<48x52xbf16>
    %c592 = arith.constant 592 : index
    %c0_66 = arith.constant 0 : index
    %238 = vector.load %arg2[%c592, %c0_66] : memref<640x128xbf16, #tpu.memory_space<vmem>>, vector<8x48xbf16>
    %cst_67 = arith.constant dense<0.000000e+00> : vector<8x52xf32>
    %239 = tpu.matmul %238, %237, %cst_67 {dimension_numbers = #tpu.dot_dimension_numbers<[1], [0], [0], [1], [0, 0, 1, 1], [], []>} : vector<8x48xbf16>, vector<48x52xbf16>, vector<8x52xf32> -> vector<8x52xf32>
    %240 = arith.addf %226, %239 : vector<8x52xf32>
    %c192_68 = arith.constant 192 : index
    %c0_69 = arith.constant 0 : index
    %241 = vector.load %arg3[%c192_68, %c0_69] : memref<216x1xf32, #tpu.memory_space<vmem>>, vector<8x1xf32>
    %242 = vector.broadcast %241 : vector<8x1xf32> to vector<8x52xf32>
    %243 = arith.addf %240, %242 : vector<8x52xf32>
    %cst_70 = arith.constant 0.000000e+00 : f32
    %244 = vector.broadcast %cst_70 : f32 to vector<8x52xf32>
    %245 = arith.maximumf %243, %244 : vector<8x52xf32>
    %cst_71 = arith.constant 0.000000e+00 : f32
    %246 = vector.broadcast %cst_71 : f32 to vector<8x48xf32>
    %247 = vector.extract_strided_slice %245 {offsets = [0, 0], sizes = [8, 24], strides = [1, 1]} : vector<8x52xf32> to vector<8x24xf32>
    %248 = vector.extract_strided_slice %245 {offsets = [0, 26], sizes = [8, 24], strides = [1, 1]} : vector<8x52xf32> to vector<8x24xf32>
    %249 = tpu.concatenate %247, %248 in 1 : vector<8x24xf32>, vector<8x24xf32> -> vector<8x48xf32>
    %250 = vector.extract_strided_slice %245 {offsets = [0, 1], sizes = [8, 24], strides = [1, 1]} : vector<8x52xf32> to vector<8x24xf32>
    %251 = vector.extract_strided_slice %245 {offsets = [0, 27], sizes = [8, 24], strides = [1, 1]} : vector<8x52xf32> to vector<8x24xf32>
    %252 = tpu.concatenate %250, %251 in 1 : vector<8x24xf32>, vector<8x24xf32> -> vector<8x48xf32>
    %253 = vector.extract_strided_slice %245 {offsets = [0, 2], sizes = [8, 24], strides = [1, 1]} : vector<8x52xf32> to vector<8x24xf32>
    %254 = vector.extract_strided_slice %245 {offsets = [0, 28], sizes = [8, 24], strides = [1, 1]} : vector<8x52xf32> to vector<8x24xf32>
    %255 = tpu.concatenate %253, %254 in 1 : vector<8x24xf32>, vector<8x24xf32> -> vector<8x48xf32>
    %256 = tpu.concatenate %249, %252, %255 in 0 : vector<8x48xf32>, vector<8x48xf32>, vector<8x48xf32> -> vector<24x48xf32>
    %257 = arith.truncf %256 : vector<24x48xf32> to vector<24x48xbf16>
    %c608 = arith.constant 608 : index
    %c0_72 = arith.constant 0 : index
    %258 = vector.load %arg2[%c608, %c0_72] : memref<640x128xbf16, #tpu.memory_space<vmem>>, vector<8x24xbf16>
    %cst_73 = arith.constant dense<0.000000e+00> : vector<8x48xf32>
    %259 = tpu.matmul %258, %257, %cst_73 {dimension_numbers = #tpu.dot_dimension_numbers<[1], [0], [0], [1], [0, 0, 1, 1], [], []>} : vector<8x24xbf16>, vector<24x48xbf16>, vector<8x48xf32> -> vector<8x48xf32>
    %260 = arith.addf %246, %259 : vector<8x48xf32>
    %c200 = arith.constant 200 : index
    %c0_74 = arith.constant 0 : index
    %261 = vector.load %arg3[%c200, %c0_74] : memref<216x1xf32, #tpu.memory_space<vmem>>, vector<8x1xf32>
    %262 = vector.broadcast %261 : vector<8x1xf32> to vector<8x48xf32>
    %263 = arith.addf %260, %262 : vector<8x48xf32>
    %cst_75 = arith.constant 0.000000e+00 : f32
    %264 = vector.broadcast %cst_75 : f32 to vector<8x48xf32>
    %265 = arith.maximumf %263, %264 : vector<8x48xf32>
    %cst_76 = arith.constant 0.000000e+00 : f32
    %266 = vector.broadcast %cst_76 : f32 to vector<2x48xf32>
    %267 = arith.truncf %265 : vector<8x48xf32> to vector<8x48xbf16>
    %c624 = arith.constant 624 : index
    %c0_77 = arith.constant 0 : index
    %268 = vector.load %arg2[%c624, %c0_77] : memref<640x128xbf16, #tpu.memory_space<vmem>>, vector<2x8xbf16>
    %cst_78 = arith.constant dense<0.000000e+00> : vector<2x48xf32>
    %269 = tpu.matmul %268, %267, %cst_78 {dimension_numbers = #tpu.dot_dimension_numbers<[1], [0], [0], [1], [0, 0, 1, 1], [], []>} : vector<2x8xbf16>, vector<8x48xbf16>, vector<2x48xf32> -> vector<2x48xf32>
    %270 = arith.addf %266, %269 : vector<2x48xf32>
    %c208 = arith.constant 208 : index
    %c0_79 = arith.constant 0 : index
    %271 = vector.load %arg3[%c208, %c0_79] : memref<216x1xf32, #tpu.memory_space<vmem>>, vector<2x1xf32>
    %272 = vector.broadcast %271 : vector<2x1xf32> to vector<2x48xf32>
    %273 = arith.addf %270, %272 : vector<2x48xf32>
    %c0_80 = arith.constant 0 : index
    %c0_81 = arith.constant 0 : index
    %c0_82 = arith.constant 0 : index
    %274 = vector.load %arg4[%c0_80, %c0_81, %c0_82] : memref<1x2x48xf32, #tpu.memory_space<vmem>>, vector<1x2x48xf32>
    %275 = vector.shape_cast %274 : vector<1x2x48xf32> to vector<2x48xf32>
    %276 = vector.shape_cast %273 : vector<2x48xf32> to vector<1x2x48xf32>
    tpu.vector_store %arg4[%c0_80, %c0_81, %c0_82], %276 {strides = array<i32>} : memref<1x2x48xf32, #tpu.memory_space<vmem>>, vector<1x2x48xf32>,
    return
  }
  func.func @transform_0(%arg0: i32) -> (i32, i32, i32) {
    %c0_i32 = arith.constant 0 : i32
    %c0_i32_0 = arith.constant 0 : i32
    %c0_i32_1 = arith.constant 0 : i32
    return %arg0, %c0_i32, %c0_i32_0 : i32, i32, i32
  }
  func.func @transform_1(%arg0: i32) -> (i32, i32) {
    %c0_i32 = arith.constant 0 : i32
    %c0_i32_0 = arith.constant 0 : i32
    %c0_i32_1 = arith.constant 0 : i32
    return %c0_i32, %c0_i32_0 : i32, i32
  }
  func.func @transform_2(%arg0: i32) -> (i32, i32) {
    %c0_i32 = arith.constant 0 : i32
    %c0_i32_0 = arith.constant 0 : i32
    %c0_i32_1 = arith.constant 0 : i32
    return %c0_i32, %c0_i32_0 : i32, i32
  }
  func.func @transform_3(%arg0: i32) -> (i32, i32, i32) {
    %c0_i32 = arith.constant 0 : i32
    %c0_i32_0 = arith.constant 0 : i32
    %c0_i32_1 = arith.constant 0 : i32
    return %arg0, %c0_i32, %c0_i32_0 : i32, i32, i32
  }
}

</mosaic_0001>

<llo_original>
// kernel: forward.1
$region0: #{forward.1}
  #allocation0 [shape = 'u32[]', space=smem, size = 0x4, offset = 0x4, fixed_abs, tag = 'smem constant byte address 0x4 - core index']
  #allocation1 [shape = 'u32[144,128]{1,0:T(1,128)}', space=vmem, size = 0x12000, scoped, tag = 'internal scratch']
  %s0 = inlined_call_operand.vmem [shape: f32[1,1,128], index: 0, kind: input, shape index: {}]
  %s1 = inlined_call_operand.hbm [shape: bf16[640,128], index: 1, kind: input, shape index: {}]
  %s2 = inlined_call_operand.vmem [shape: f32[216,1], index: 2, kind: input, shape index: {}]
  %s3 = inlined_call_operand.vmem [shape: f32[1,2,48], index: 3, kind: output, shape index: {}]
  %s4 = sld [smem:[#allocation0]]
  $region26: #{forward.1} parent=0
    _
  %s6 = ssub.s32 1, %s4
  %s7 = scalar_select 0, %s6, %s4
  $region1: #{forward.1} parent=0
    #allocation2 [shape = 'u8[163840]{0}', space=vmem, size = 0x28000, scoped, tag = 'input window, operand 1, single buffered']
    #allocation3 [shape = 's32[1]{0}', space=sflag, size = 0x4, scoped, tag = 'scoped memory for forward.1']
    %8 = vsyncpa [#allocation3], 0
    // Predicated region
    $region2: #{forward.1} parent=1 // pred_check
      _
    $region3: #{forward.1} parent=1 // pred_check_branch
      %10 = sbr.rel (0) target = $region5
    $region4: #{forward.1} parent=1 // pred_region
      _
    $region5: #{forward.1} parent=1 // pred_fallthru
      _
    // Predicated region
    $region6: #{forward.1} parent=1 // pred_check
      _
    $region7: #{forward.1} parent=1 // pred_check_branch
      %12 = sbr.rel (0) target = $region9
    $region8: #{forward.1} parent=1 // pred_region
      %s14 = ssub.s32 5120, 5120
      %15 = vsyncadd [#allocation3], %s14
      %s16 = sshll.u32 [#allocation2], 4
      %s17 = int_to_ptr.vmem [resolvable:$true] %s16
      %22 = dma.hbm_to_vmem [thread:$0]  %s1, 5120, %s17, [#allocation3], 64, 64, 4
    $region9: #{forward.1} parent=1 // pred_fallthru
      _
    // Predicated region
    $region10: #{forward.1} parent=1 // pred_check
      _
    $region11: #{forward.1} parent=1 // pred_check_branch
      %24 = sbr.rel (0) target = $region13
    $region12: #{forward.1} parent=1 // pred_region
      _
    $region13: #{forward.1} parent=1 // pred_fallthru
      _
    // Predicated region
    $region14: #{forward.1} parent=1 // pred_check
      _
    $region15: #{forward.1} parent=1 // pred_check_branch
      %26 = sbr.rel (0) target = $region17
    $region16: #{forward.1} parent=1 // pred_region
      %27 = dma.done [#allocation3], 5120
    $region17: #{forward.1} parent=1 // pred_fallthru
      _
    %v29 = vld [vmem:[%s0] sm:$0x1]
    %v31 = vlaneseq
    %v32 = vshrl.u32 %v31, 7
    %v33 = vsub.s32 0, %v32
    %v34 = vrot.slane %v29, %v33
    %35 = vrot.lane.b32.xlu0 %v34, 126
    %v36 = vpop.permute.xlu0 %35
    %vm38 = vcmask 506880
    %v39 = vsel %vm38, %v29, %v36
    %40 = vrot.lane.b32.xlu0 %v34, 127
    %v41 = vpop.permute.xlu0 %40
    %43 = vrot.lane.b32.xlu0 %v34, 125
    %v44 = vpop.permute.xlu0 %43
    %v46 = vsel %vm38, %v41, %v44
    %47 = vrot.lane.b32.xlu0 %v34, 124
    %v48 = vpop.permute.xlu0 %47
    %v50 = vsel %vm38, %v36, %v48
    %v52 = vrot.slane %v46, 7
    %v55 = vrot.slane %v50, 6
    %vm57 = vcmask 1040384
    %v58 = vsel %vm57, %v39, %v52
    %vm59 = vcmask 1041408
    %v60 = vsel %vm59, %v58, %v55
    %v61 = vpack.c.bf16 %v60, %v60
    %v62 = vld [vmem:[#allocation2] sm:$0xf]
    %v63 = vld [vmem:[%s2] sm:$0xff]
    %65 = vset.pattern.permute.xlu0 0
    %66 = vperm.xlu0 %65, %v63
    %v67 = vpop.permute.xlu0 %66
    %vm69 = vcmask 23552
    %v71 = vsel %vm69, %v62, 0
    %v73 = vsel %vm57, 4294967295, 65535
    %v74 = vsel %vm59, %v73, 0
    %v76 = vand.u32 %v61, %v74
    %78 = vmatprep.subr.bf16.mxu0 0
    %79 = vmatpush1.bf16.msra.mxu0 %v76
    %80 = vmatprep.subr.bf16.mxu0 0
    %81 = vmatpush1.bf16.msra.mxu0 0
    %82 = vmatprep.subr.bf16.mxu0 0
    %83 = vmatpush1.bf16.msra.mxu0 0
    %84 = vmatprep.subr.bf16.mxu0 0
    %85 = vmatpush1.bf16.msra.mxu0 0
    %86 = vmatprep.subr.bf16.mxu0 0
    %87 = vmatpush1.bf16.msra.mxu0 0
    %88 = vmatprep.subr.bf16.mxu0 0
    %89 = vmatpush1.bf16.msra.mxu0 0
    %90 = vmatprep.subr.bf16.mxu0 0
    %91 = vmatpush1.bf16.msra.mxu0 0
    %92 = vmatprep.subr.bf16.mxu0 0
    %93 = vmatpush1.bf16.msra.mxu0 0
    %94 = vmatprep.subr.bf16.mxu0 0
    %95 = vmatpush1.bf16.msra.mxu0 0
    %96 = vmatprep.subr.bf16.mxu0 0
    %97 = vmatpush1.bf16.msra.mxu0 0
    %98 = vmatprep.subr.bf16.mxu0 0
    %99 = vmatpush1.bf16.msra.mxu0 0
    %100 = vmatprep.subr.bf16.mxu0 0
    %101 = vmatpush1.bf16.msra.mxu0 0
    %102 = vmatprep.subr.bf16.mxu0 0
    %103 = vmatpush1.bf16.msra.mxu0 0
    %104 = vmatprep.subr.bf16.mxu0 0
    %105 = vmatpush1.bf16.msra.mxu0 0
    %106 = vmatprep.subr.bf16.mxu0 0
    %107 = vmatpush1.bf16.msra.mxu0 0
    %108 = vmatprep.subr.bf16.mxu0 0
    %109 = vmatpush1.bf16.msra.mxu0 0
    %110 = vmatprep.mubr.bf16.mxu0 0
    %111 = vmatmul.mubr.bf16.gmra.mrb[0].mxu0 %v71
    %v112 = vpop.f32.mrb[0].mxu0
    %v113 = vadd.f32 %v67, %v112
    %v114 = vpop.f32.mrb[0].mxu0
    %v115 = vpop.f32.mrb[0].mxu0
    %v116 = vpop.f32.mrb[0].mxu0
    %117 = vdwg.mxu0
    %v118 = vmax.f32 %v113, 0.0
    %120 = vrot.lane.b32.xlu0 %v118, 126
    %v121 = vpop.permute.xlu0 %120
    %vm123 = vcmask 490496
    %v124 = vsel %vm123, %v118, %v121
    %125 = vrot.lane.b32.xlu0 %v118, 127
    %v126 = vpop.permute.xlu0 %125
    %128 = vrot.lane.b32.xlu0 %v118, 125
    %v129 = vpop.permute.xlu0 %128
    %v131 = vsel %vm123, %v126, %v129
    %132 = vrot.lane.b32.xlu0 %v118, 124
    %v133 = vpop.permute.xlu0 %132
    %v135 = vsel %vm123, %v121, %v133
    %v136 = vpack.c.bf16 %v131, %v124
    %v137 = vpack.c.bf16 %v135, %v135
    %v138 = vld [vmem:[#allocation2 + $0x8] sm:$0xf]
    %v139 = vld [vmem:[%s2 + $0x8] sm:$0xff]
    %141 = vset.pattern.permute.xlu0 0
    %142 = vperm.xlu0 %141, %v139
    %v143 = vpop.permute.xlu0 %142
    %vm145 = vcmask 195584
    %v147 = vsel %vm145, %v138, 0
    %vm149 = vcmask 1043456
    %v151 = vsel %vm149, %v137, 0
    %153 = vmatprep.subr.bf16.mxu0 0
    %154 = vmatpush1.bf16.msra.mxu0 %v136
    %155 = vmatprep.subr.bf16.mxu0 0
    %156 = vmatpush1.bf16.msra.mxu0 %v151
    %157 = vmatprep.subr.bf16.mxu0 0
    %158 = vmatpush1.bf16.msra.mxu0 0
    %159 = vmatprep.subr.bf16.mxu0 0
    %160 = vmatpush1.bf16.msra.mxu0 0
    %161 = vmatprep.subr.bf16.mxu0 0
    %162 = vmatpush1.bf16.msra.mxu0 0
    %163 = vmatprep.subr.bf16.mxu0 0
    %164 = vmatpush1.bf16.msra.mxu0 0
    %165 = vmatprep.subr.bf16.mxu0 0
    %166 = vmatpush1.bf16.msra.mxu0 0
    %167 = vmatprep.subr.bf16.mxu0 0
    %168 = vmatpush1.bf16.msra.mxu0 0
    %169 = vmatprep.subr.bf16.mxu0 0
    %170 = vmatpush1.bf16.msra.mxu0 0
    %171 = vmatprep.subr.bf16.mxu0 0
    %172 = vmatpush1.bf16.msra.mxu0 0
    %173 = vmatprep.subr.bf16.mxu0 0
    %174 = vmatpush1.bf16.msra.mxu0 0
    %175 = vmatprep.subr.bf16.mxu0 0
    %176 = vmatpush1.bf16.msra.mxu0 0
    %177 = vmatprep.subr.bf16.mxu0 0
    %178 = vmatpush1.bf16.msra.mxu0 0
    %179 = vmatprep.subr.bf16.mxu0 0
    %180 = vmatpush1.bf16.msra.mxu0 0
    %181 = vmatprep.subr.bf16.mxu0 0
    %182 = vmatpush1.bf16.msra.mxu0 0
    %183 = vmatprep.subr.bf16.mxu0 0
    %184 = vmatpush1.bf16.msra.mxu0 0
    %185 = vmatprep.mubr.bf16.mxu0 0
    %186 = vmatmul.mubr.bf16.gmra.mrb[0].mxu0 %v147
    %v187 = vpop.f32.mrb[0].mxu0
    %v188 = vadd.f32 %v143, %v187
    %v189 = vpop.f32.mrb[0].mxu0
    %v190 = vpop.f32.mrb[0].mxu0
    %v191 = vpop.f32.mrb[0].mxu0
    %192 = vdwg.mxu0
    %v193 = vmax.f32 %v188, 0.0
    %v194 = vld [vmem:[#allocation2 + $0x10] sm:$0xf]
    %v195 = vld [vmem:[#allocation2 + $0x14] sm:$0xf]
    %v196 = vld [vmem:[#allocation2 + $0x18] sm:$0xf]
    %v197 = vld [vmem:[#allocation2 + $0x1c] sm:$0xf]
    %v198 = vld [vmem:[#allocation2 + $0x20] sm:$0xf]
    %v199 = vld [vmem:[#allocation2 + $0x24] sm:$0xf]
    %v200 = vld [vmem:[#allocation2 + $0x28] sm:$0xf]
    %v201 = vld [vmem:[#allocation2 + $0x2c] sm:$0xf]
    %v202 = vld [vmem:[#allocation2 + $0x30] sm:$0xf]
    %v203 = vld [vmem:[#allocation2 + $0x34] sm:$0xf]
    %v204 = vld [vmem:[#allocation2 + $0x38] sm:$0xf]
    %v205 = vld [vmem:[#allocation2 + $0x3c] sm:$0xf]
    %v206 = vld [vmem:[#allocation2 + $0x40] sm:$0xf]
    %v207 = vld [vmem:[#allocation2 + $0x44] sm:$0xf]
    %v208 = vld [vmem:[#allocation2 + $0x48] sm:$0xf]
    %v209 = vpack.c.bf16 %v193, %v193
    %v225 = vunpack.c.l.b16 %v194
    %v226 = vunpack.c.l.b16 %v195
    %v227 = vunpack.c.l.b16 %v196
    %v228 = vunpack.c.l.b16 %v197
    %v229 = vunpack.c.l.b16 %v198
    %v230 = vunpack.c.l.b16 %v199
    %v231 = vunpack.c.l.b16 %v200
    %v232 = vunpack.c.l.b16 %v201
    %v233 = vunpack.c.l.b16 %v202
    %v234 = vunpack.c.l.b16 %v203
    %v235 = vunpack.c.l.b16 %v204
    %v236 = vunpack.c.l.b16 %v205
    %v237 = vunpack.c.l.b16 %v206
    %v238 = vunpack.c.l.b16 %v207
    %v239 = vunpack.c.l.b16 %v208
    %v240 = vpack.c.b16 %v226, %v225
    %v241 = vpack.c.b16 %v228, %v227
    %v242 = vpack.c.b16 %v230, %v229
    %v243 = vpack.c.b16 %v232, %v231
    %v244 = vpack.c.b16 %v234, %v233
    %v245 = vpack.c.b16 %v236, %v235
    %v246 = vpack.c.b16 %v238, %v237
    %v247 = vpack.c.b16 %v239, %v239
    %vm255 = vcmask 982016
    %v257 = vsel %vm255, %v209, 0
    %v260 = vsel %vm149, %v247, 0
    %262 = vmatprep.subr.bf16.mxu0 0
    %263 = vmatpush1.bf16.msra.mxu0 %v240
    %264 = vmatprep.subr.bf16.mxu0 0
    %265 = vmatpush1.bf16.msra.mxu0 %v241
    %266 = vmatprep.subr.bf16.mxu0 0
    %267 = vmatpush1.bf16.msra.mxu0 %v242
    %268 = vmatprep.subr.bf16.mxu0 0
    %269 = vmatpush1.bf16.msra.mxu0 %v243
    %270 = vmatprep.subr.bf16.mxu0 0
    %271 = vmatpush1.bf16.msra.mxu0 %v244
    %272 = vmatprep.subr.bf16.mxu0 0
    %273 = vmatpush1.bf16.msra.mxu0 %v245
    %274 = vmatprep.subr.bf16.mxu0 0
    %275 = vmatpush1.bf16.msra.mxu0 %v246
    %276 = vmatprep.subr.bf16.mxu0 0
    %277 = vmatpush1.bf16.msra.mxu0 %v260
    %278 = vmatprep.subr.bf16.mxu0 0
    %279 = vmatpush1.bf16.msra.mxu0 0
    %280 = vmatprep.subr.bf16.mxu0 0
    %281 = vmatpush1.bf16.msra.mxu0 0
    %282 = vmatprep.subr.bf16.mxu0 0
    %283 = vmatpush1.bf16.msra.mxu0 0
    %284 = vmatprep.subr.bf16.mxu0 0
    %285 = vmatpush1.bf16.msra.mxu0 0
    %286 = vmatprep.subr.bf16.mxu0 0
    %287 = vmatpush1.bf16.msra.mxu0 0
    %288 = vmatprep.subr.bf16.mxu0 0
    %289 = vmatpush1.bf16.msra.mxu0 0
    %290 = vmatprep.subr.bf16.mxu0 0
    %291 = vmatpush1.bf16.msra.mxu0 0
    %292 = vmatprep.subr.bf16.mxu0 0
    %293 = vmatpush1.bf16.msra.mxu0 0
    %294 = vmatprep.mubr.bf16.mxu0 0
    %295 = vmatmul.mubr.bf16.gmra.mrb[0].mxu0 %v257
    %v296 = vpop.f32.mrb[0].mxu0
    %v297 = vadd.f32 0.0, %v296
    %v298 = vpop.f32.mrb[0].mxu0
    %v299 = vpop.f32.mrb[0].mxu0
    %v300 = vpop.f32.mrb[0].mxu0
    %301 = vdwg.mxu0
    %303 = vrot.lane.b32.xlu0 %v297, 68
    %v304 = vpop.permute.xlu0 %303
    %v306 = vmax.f32 %v297, %v304
    %308 = vrot.lane.b32.xlu0 %v306, 126
    %v309 = vpop.permute.xlu0 %308
    %vm311 = vcmask 228352
    %v312 = vsel %vm311, %v306, %v309
    %313 = vrot.lane.b32.xlu0 %v306, 127
    %v314 = vpop.permute.xlu0 %313
    %316 = vrot.lane.b32.xlu0 %v306, 125
    %v317 = vpop.permute.xlu0 %316
    %v319 = vsel %vm311, %v314, %v317
    %320 = vrot.lane.b32.xlu0 %v306, 124
    %v321 = vpop.permute.xlu0 %320
    %v323 = vsel %vm311, %v309, %v321
    %v324 = vpack.c.bf16 %v319, %v312
    %v325 = vpack.c.bf16 %v323, %v323
    %v326 = vld [vmem:[#allocation2 + $0x50] sm:$0xf]
    %v327 = vld [vmem:[#allocation2 + $0x54] sm:$0xf]
    %v328 = vld [vmem:[%s2 + $0x10] sm:$0xff]
    %v329 = vld [vmem:[%s2 + $0x18] sm:$0xff]
    %331 = vset.pattern.permute.xlu0 0
    %332 = vperm.xlu0 %331, %v328
    %v333 = vpop.permute.xlu0 %332
    %336 = vset.pattern.permute.xlu0 0
    %337 = vperm.xlu0 %336, %v329
    %v338 = vpop.permute.xlu0 %337
    %v342 = vunpack.c.l.b16 %v326
    %v343 = vunpack.c.l.b16 %v327
    %v344 = vpack.c.b16 %v343, %v342
    %v346 = vsel %vm145, %v344, 0
    %v349 = vsel %vm149, %v325, 0
    %351 = vmatprep.subr.bf16.mxu0 0
    %352 = vmatpush1.bf16.msra.mxu0 %v324
    %353 = vmatprep.subr.bf16.mxu0 0
    %354 = vmatpush1.bf16.msra.mxu0 %v349
    %355 = vmatprep.subr.bf16.mxu0 0
    %356 = vmatpush1.bf16.msra.mxu0 0
    %357 = vmatprep.subr.bf16.mxu0 0
    %358 = vmatpush1.bf16.msra.mxu0 0
    %359 = vmatprep.subr.bf16.mxu0 0
    %360 = vmatpush1.bf16.msra.mxu0 0
    %361 = vmatprep.subr.bf16.mxu0 0
    %362 = vmatpush1.bf16.msra.mxu0 0
    %363 = vmatprep.subr.bf16.mxu0 0
    %364 = vmatpush1.bf16.msra.mxu0 0
    %365 = vmatprep.subr.bf16.mxu0 0
    %366 = vmatpush1.bf16.msra.mxu0 0
    %367 = vmatprep.subr.bf16.mxu0 0
    %368 = vmatpush1.bf16.msra.mxu0 0
    %369 = vmatprep.subr.bf16.mxu0 0
    %370 = vmatpush1.bf16.msra.mxu0 0
    %371 = vmatprep.subr.bf16.mxu0 0
    %372 = vmatpush1.bf16.msra.mxu0 0
    %373 = vmatprep.subr.bf16.mxu0 0
    %374 = vmatpush1.bf16.msra.mxu0 0
    %375 = vmatprep.subr.bf16.mxu0 0
    %376 = vmatpush1.bf16.msra.mxu0 0
    %377 = vmatprep.subr.bf16.mxu0 0
    %378 = vmatpush1.bf16.msra.mxu0 0
    %379 = vmatprep.subr.bf16.mxu0 0
    %380 = vmatpush1.bf16.msra.mxu0 0
    %381 = vmatprep.subr.bf16.mxu0 0
    %382 = vmatpush1.bf16.msra.mxu0 0
    %383 = vmatprep.mubr.bf16.mxu0 0
    %384 = vmatmul.mubr.bf16.gmra.mrb[0].mxu0 %v346
    %v385 = vpop.f32.mrb[0].mxu0
    %v386 = vadd.f32 %v333, %v385
    %v387 = vpop.f32.mrb[0].mxu0
    %v388 = vpop.f32.mrb[0].mxu0
    %v389 = vadd.f32 %v338, %v388
    %v390 = vpop.f32.mrb[0].mxu0
    %391 = vdwg.mxu0
    %v392 = vmax.f32 %v386, 0.0
    %v393 = vmax.f32 %v389, 0.0
    %396 = vrot.lane.b32.xlu0 %v392, 126
    %v397 = vpop.permute.xlu0 %396
    %398 = vrot.lane.b32.xlu0 %v393, 126
    %v399 = vpop.permute.xlu0 %398
    %vm402 = vcmask 211968
    %v403 = vsel %vm402, %v392, %v397
    %v404 = vsel %vm402, %v393, %v399
    %405 = vrot.lane.b32.xlu0 %v392, 127
    %v406 = vpop.permute.xlu0 %405
    %407 = vrot.lane.b32.xlu0 %v393, 127
    %v408 = vpop.permute.xlu0 %407
    %411 = vrot.lane.b32.xlu0 %v392, 125
    %v412 = vpop.permute.xlu0 %411
    %413 = vrot.lane.b32.xlu0 %v393, 125
    %v414 = vpop.permute.xlu0 %413
    %v417 = vsel %vm402, %v406, %v412
    %v418 = vsel %vm402, %v408, %v414
    %419 = vrot.lane.b32.xlu0 %v392, 124
    %v420 = vpop.permute.xlu0 %419
    %421 = vrot.lane.b32.xlu0 %v393, 124
    %v422 = vpop.permute.xlu0 %421
    %v425 = vsel %vm402, %v397, %v420
    %v426 = vsel %vm402, %v399, %v422
    %v427 = vpack.c.bf16 %v404, %v403
    %v428 = vpack.c.bf16 %v418, %v417
    %v429 = vpack.c.bf16 %v426, %v425
    %v430 = vld [vmem:[#allocation2 + $0x58] sm:$0xf]
    %v431 = vld [vmem:[#allocation2 + $0x5c] sm:$0xf]
    %v432 = vld [vmem:[%s2 + $0x20] sm:$0xff]
    %v433 = vld [vmem:[%s2 + $0x28] sm:$0xff]
    %435 = vset.pattern.permute.xlu0 0
    %436 = vperm.xlu0 %435, %v432
    %v437 = vpop.permute.xlu0 %436
    %440 = vset.pattern.permute.xlu0 0
    %441 = vperm.xlu0 %440, %v433
    %v442 = vpop.permute.xlu0 %441
    %v446 = vunpack.c.l.b16 %v430
    %v447 = vunpack.c.l.b16 %v431
    %v448 = vpack.c.b16 %v447, %v446
    %vm449 = vcmask 392192
    %v451 = vsel %vm449, %v448, 0
    %453 = vmatprep.subr.bf16.mxu0 0
    %454 = vmatpush1.bf16.msra.mxu0 %v427
    %455 = vmatprep.subr.bf16.mxu0 0
    %456 = vmatpush1.bf16.msra.mxu0 %v428
    %457 = vmatprep.subr.bf16.mxu0 0
    %458 = vmatpush1.bf16.msra.mxu0 %v429
    %459 = vmatprep.subr.bf16.mxu0 0
    %460 = vmatpush1.bf16.msra.mxu0 0
    %461 = vmatprep.subr.bf16.mxu0 0
    %462 = vmatpush1.bf16.msra.mxu0 0
    %463 = vmatprep.subr.bf16.mxu0 0
    %464 = vmatpush1.bf16.msra.mxu0 0
    %465 = vmatprep.subr.bf16.mxu0 0
    %466 = vmatpush1.bf16.msra.mxu0 0
    %467 = vmatprep.subr.bf16.mxu0 0
    %468 = vmatpush1.bf16.msra.mxu0 0
    %469 = vmatprep.subr.bf16.mxu0 0
    %470 = vmatpush1.bf16.msra.mxu0 0
    %471 = vmatprep.subr.bf16.mxu0 0
    %472 = vmatpush1.bf16.msra.mxu0 0
    %473 = vmatprep.subr.bf16.mxu0 0
    %474 = vmatpush1.bf16.msra.mxu0 0
    %475 = vmatprep.subr.bf16.mxu0 0
    %476 = vmatpush1.bf16.msra.mxu0 0
    %477 = vmatprep.subr.bf16.mxu0 0
    %478 = vmatpush1.bf16.msra.mxu0 0
    %479 = vmatprep.subr.bf16.mxu0 0
    %480 = vmatpush1.bf16.msra.mxu0 0
    %481 = vmatprep.subr.bf16.mxu0 0
    %482 = vmatpush1.bf16.msra.mxu0 0
    %483 = vmatprep.subr.bf16.mxu0 0
    %484 = vmatpush1.bf16.msra.mxu0 0
    %485 = vmatprep.mubr.bf16.mxu0 0
    %486 = vmatmul.mubr.bf16.gmra.mrb[0].mxu0 %v451
    %v487 = vpop.f32.mrb[0].mxu0
    %v488 = vadd.f32 %v437, %v487
    %v489 = vpop.f32.mrb[0].mxu0
    %v490 = vpop.f32.mrb[0].mxu0
    %v491 = vadd.f32 %v442, %v490
    %v492 = vpop.f32.mrb[0].mxu0
    %493 = vdwg.mxu0
    %v494 = vmax.f32 %v488, 0.0
    %v495 = vmax.f32 %v491, 0.0
    %v496 = vld [vmem:[#allocation2 + $0x60] sm:$0xf]
    %v497 = vld [vmem:[#allocation2 + $0x64] sm:$0xf]
    %v498 = vld [vmem:[#allocation2 + $0x68] sm:$0xf]
    %v499 = vld [vmem:[#allocation2 + $0x6c] sm:$0xf]
    %v500 = vld [vmem:[#allocation2 + $0x70] sm:$0xf]
    %v501 = vld [vmem:[#allocation2 + $0x74] sm:$0xf]
    %v502 = vld [vmem:[#allocation2 + $0x78] sm:$0x3]
    %v503 = vpack.c.bf16 %v495, %v494
    %v511 = vunpack.c.l.b16 %v496
    %v512 = vunpack.c.l.b16 %v497
    %v513 = vunpack.c.l.b16 %v498
    %v514 = vunpack.c.l.b16 %v499
    %v515 = vunpack.c.l.b16 %v500
    %v516 = vunpack.c.l.b16 %v501
    %v517 = vunpack.c.l.b16 %v502
    %v518 = vpack.c.b16 %v512, %v511
    %v519 = vpack.c.b16 %v514, %v513
    %v520 = vpack.c.b16 %v516, %v515
    %v521 = vpack.c.b16 %v517, %v517
    %vm525 = vcmask 424960
    %v527 = vsel %vm525, %v503, 0
    %v530 = vsel %vm59, %v521, 0
    %532 = vmatprep.subr.bf16.mxu0 0
    %533 = vmatpush1.bf16.msra.mxu0 %v518
    %534 = vmatprep.subr.bf16.mxu0 0
    %535 = vmatpush1.bf16.msra.mxu0 %v519
    %536 = vmatprep.subr.bf16.mxu0 0
    %537 = vmatpush1.bf16.msra.mxu0 %v520
    %538 = vmatprep.subr.bf16.mxu0 0
    %539 = vmatpush1.bf16.msra.mxu0 %v530
    %540 = vmatprep.subr.bf16.mxu0 0
    %541 = vmatpush1.bf16.msra.mxu0 0
    %542 = vmatprep.subr.bf16.mxu0 0
    %543 = vmatpush1.bf16.msra.mxu0 0
    %544 = vmatprep.subr.bf16.mxu0 0
    %545 = vmatpush1.bf16.msra.mxu0 0
    %546 = vmatprep.subr.bf16.mxu0 0
    %547 = vmatpush1.bf16.msra.mxu0 0
    %548 = vmatprep.subr.bf16.mxu0 0
    %549 = vmatpush1.bf16.msra.mxu0 0
    %550 = vmatprep.subr.bf16.mxu0 0
    %551 = vmatpush1.bf16.msra.mxu0 0
    %552 = vmatprep.subr.bf16.mxu0 0
    %553 = vmatpush1.bf16.msra.mxu0 0
    %554 = vmatprep.subr.bf16.mxu0 0
    %555 = vmatpush1.bf16.msra.mxu0 0
    %556 = vmatprep.subr.bf16.mxu0 0
    %557 = vmatpush1.bf16.msra.mxu0 0
    %558 = vmatprep.subr.bf16.mxu0 0
    %559 = vmatpush1.bf16.msra.mxu0 0
    %560 = vmatprep.subr.bf16.mxu0 0
    %561 = vmatpush1.bf16.msra.mxu0 0
    %562 = vmatprep.subr.bf16.mxu0 0
    %563 = vmatpush1.bf16.msra.mxu0 0
    %564 = vmatprep.mubr.bf16.mxu0 0
    %565 = vmatmul.mubr.bf16.gmra.mrb[0].mxu0 %v527
    %v566 = vpop.f32.mrb[0].mxu0
    %v567 = vadd.f32 0.0, %v566
    %v568 = vpop.f32.mrb[0].mxu0
    %v569 = vpop.f32.mrb[0].mxu0
    %v570 = vadd.f32 0.0, %v569
    %v571 = vpop.f32.mrb[0].mxu0
    %572 = vdwg.mxu0
    %575 = vrot.lane.b32.xlu0 %v567, 102
    %v576 = vpop.permute.xlu0 %575
    %577 = vrot.lane.b32.xlu0 %v570, 102
    %v578 = vpop.permute.xlu0 %577
    %v581 = vmax.f32 %v567, %v576
    %v582 = vmax.f32 %v570, %v578
    %585 = vrot.lane.b32.xlu0 %v581, 126
    %v586 = vpop.permute.xlu0 %585
    %587 = vrot.lane.b32.xlu0 %v582, 126
    %v588 = vpop.permute.xlu0 %587
    %vm591 = vcmask 89088
    %v592 = vsel %vm591, %v581, %v586
    %v593 = vsel %vm591, %v582, %v588
    %594 = vrot.lane.b32.xlu0 %v581, 127
    %v595 = vpop.permute.xlu0 %594
    %596 = vrot.lane.b32.xlu0 %v582, 127
    %v597 = vpop.permute.xlu0 %596
    %600 = vrot.lane.b32.xlu0 %v581, 125
    %v601 = vpop.permute.xlu0 %600
    %602 = vrot.lane.b32.xlu0 %v582, 125
    %v603 = vpop.permute.xlu0 %602
    %v606 = vsel %vm591, %v595, %v601
    %v607 = vsel %vm591, %v597, %v603
    %608 = vrot.lane.b32.xlu0 %v581, 124
    %v609 = vpop.permute.xlu0 %608
    %610 = vrot.lane.b32.xlu0 %v582, 124
    %v611 = vpop.permute.xlu0 %610
    %v614 = vsel %vm591, %v586, %v609
    %v615 = vsel %vm591, %v588, %v611
    %v616 = vpack.c.bf16 %v593, %v592
    %v617 = vpack.c.bf16 %v607, %v606
    %v618 = vpack.c.bf16 %v615, %v614
    %v619 = vld [vmem:[#allocation2 + $0x80] sm:$0xf]
    %v620 = vld [vmem:[#allocation2 + $0x84] sm:$0xf]
    %v621 = vld [vmem:[#allocation2 + $0x88] sm:$0xf]
    %v622 = vld [vmem:[#allocation2 + $0x8c] sm:$0xf]
    %v623 = vld [vmem:[%s2 + $0x30] sm:$0xff]
    %v624 = vld [vmem:[%s2 + $0x38] sm:$0xff]
    %v625 = vld [vmem:[%s2 + $0x40] sm:$0xff]
    %v626 = vld [vmem:[%s2 + $0x48] sm:$0xff]
    %628 = vset.pattern.permute.xlu0 0
    %629 = vperm.xlu0 %628, %v623
    %v630 = vpop.permute.xlu0 %629
    %633 = vset.pattern.permute.xlu0 0
    %634 = vperm.xlu0 %633, %v624
    %v635 = vpop.permute.xlu0 %634
    %638 = vset.pattern.permute.xlu0 0
    %639 = vperm.xlu0 %638, %v625
    %v640 = vpop.permute.xlu0 %639
    %643 = vset.pattern.permute.xlu0 0
    %644 = vperm.xlu0 %643, %v626
    %v645 = vpop.permute.xlu0 %644
    %v651 = vunpack.c.l.b16 %v619
    %v652 = vunpack.c.l.b16 %v620
    %v653 = vunpack.c.l.b16 %v621
    %v654 = vunpack.c.l.b16 %v622
    %v655 = vpack.c.b16 %v652, %v651
    %v656 = vpack.c.b16 %v654, %v653
    %v658 = vsel %vm449, %v655, 0
    %v661 = vsel %vm449, %v656, 0
    %663 = vmatprep.subr.bf16.mxu0 0
    %664 = vmatpush1.bf16.msra.mxu0 %v616
    %665 = vmatprep.subr.bf16.mxu0 0
    %666 = vmatpush1.bf16.msra.mxu0 %v617
    %667 = vmatprep.subr.bf16.mxu0 0
    %668 = vmatpush1.bf16.msra.mxu0 %v618
    %669 = vmatprep.subr.bf16.mxu0 0
    %670 = vmatpush1.bf16.msra.mxu0 0
    %671 = vmatprep.subr.bf16.mxu0 0
    %672 = vmatpush1.bf16.msra.mxu0 0
    %673 = vmatprep.subr.bf16.mxu0 0
    %674 = vmatpush1.bf16.msra.mxu0 0
    %675 = vmatprep.subr.bf16.mxu0 0
    %676 = vmatpush1.bf16.msra.mxu0 0
    %677 = vmatprep.subr.bf16.mxu0 0
    %678 = vmatpush1.bf16.msra.mxu0 0
    %679 = vmatprep.subr.bf16.mxu0 0
    %680 = vmatpush1.bf16.msra.mxu0 0
    %681 = vmatprep.subr.bf16.mxu0 0
    %682 = vmatpush1.bf16.msra.mxu0 0
    %683 = vmatprep.subr.bf16.mxu0 0
    %684 = vmatpush1.bf16.msra.mxu0 0
    %685 = vmatprep.subr.bf16.mxu0 0
    %686 = vmatpush1.bf16.msra.mxu0 0
    %687 = vmatprep.subr.bf16.mxu0 0
    %688 = vmatpush1.bf16.msra.mxu0 0
    %689 = vmatprep.subr.bf16.mxu0 0
    %690 = vmatpush1.bf16.msra.mxu0 0
    %691 = vmatprep.subr.bf16.mxu0 0
    %692 = vmatpush1.bf16.msra.mxu0 0
    %693 = vmatprep.subr.bf16.mxu0 0
    %694 = vmatpush1.bf16.msra.mxu0 0
    %695 = vmatprep.mubr.bf16.mxu0 0
    %696 = vmatmul.mubr.bf16.gmra.mrb[0].mxu0 %v658
    %v697 = vpop.f32.mrb[0].mxu0
    %v698 = vadd.f32 %v630, %v697
    %v699 = vpop.f32.mrb[0].mxu0
    %v700 = vpop.f32.mrb[0].mxu0
    %v701 = vadd.f32 %v635, %v700
    %v702 = vpop.f32.mrb[0].mxu0
    %703 = vmatprep.mubr.bf16.mxu0 0
    %704 = vmatmul.mubr.bf16.gmra.mrb[0].mxu0 %v661
    %v705 = vpop.f32.mrb[0].mxu0
    %v706 = vadd.f32 %v640, %v705
    %v707 = vpop.f32.mrb[0].mxu0
    %v708 = vpop.f32.mrb[0].mxu0
    %v709 = vadd.f32 %v645, %v708
    %v710 = vpop.f32.mrb[0].mxu0
    %711 = vdwg.mxu0
    %v712 = vmax.f32 %v698, 0.0
    %v713 = vmax.f32 %v701, 0.0
    %v714 = vmax.f32 %v706, 0.0
    %v715 = vmax.f32 %v709, 0.0
    %720 = vrot.lane.b32.xlu0 %v712, 126
    %v721 = vpop.permute.xlu0 %720
    %722 = vrot.lane.b32.xlu0 %v713, 126
    %v723 = vpop.permute.xlu0 %722
    %724 = vrot.lane.b32.xlu0 %v714, 126
    %v725 = vpop.permute.xlu0 %724
    %726 = vrot.lane.b32.xlu0 %v715, 126
    %v727 = vpop.permute.xlu0 %726
    %vm732 = vcmask 72704
    %v733 = vsel %vm732, %v712, %v721
    %v734 = vsel %vm732, %v713, %v723
    %v735 = vsel %vm732, %v714, %v725
    %v736 = vsel %vm732, %v715, %v727
    %737 = vrot.lane.b32.xlu0 %v712, 127
    %v738 = vpop.permute.xlu0 %737
    %739 = vrot.lane.b32.xlu0 %v713, 127
    %v740 = vpop.permute.xlu0 %739
    %741 = vrot.lane.b32.xlu0 %v714, 127
    %v742 = vpop.permute.xlu0 %741
    %743 = vrot.lane.b32.xlu0 %v715, 127
    %v744 = vpop.permute.xlu0 %743
    %749 = vrot.lane.b32.xlu0 %v712, 125
    %v750 = vpop.permute.xlu0 %749
    %751 = vrot.lane.b32.xlu0 %v713, 125
    %v752 = vpop.permute.xlu0 %751
    %753 = vrot.lane.b32.xlu0 %v714, 125
    %v754 = vpop.permute.xlu0 %753
    %755 = vrot.lane.b32.xlu0 %v715, 125
    %v756 = vpop.permute.xlu0 %755
    %v761 = vsel %vm732, %v738, %v750
    %v762 = vsel %vm732, %v740, %v752
    %v763 = vsel %vm732, %v742, %v754
    %v764 = vsel %vm732, %v744, %v756
    %765 = vrot.lane.b32.xlu0 %v712, 124
    %v766 = vpop.permute.xlu0 %765
    %767 = vrot.lane.b32.xlu0 %v713, 124
    %v768 = vpop.permute.xlu0 %767
    %769 = vrot.lane.b32.xlu0 %v714, 124
    %v770 = vpop.permute.xlu0 %769
    %771 = vrot.lane.b32.xlu0 %v715, 124
    %v772 = vpop.permute.xlu0 %771
    %v777 = vsel %vm732, %v721, %v766
    %v778 = vsel %vm732, %v723, %v768
    %v779 = vsel %vm732, %v725, %v770
    %v780 = vsel %vm732, %v727, %v772
    %v781 = vpack.c.bf16 %v734, %v733
    %v782 = vpack.c.bf16 %v736, %v735
    %v783 = vpack.c.bf16 %v762, %v761
    %v784 = vpack.c.bf16 %v764, %v763
    %v785 = vpack.c.bf16 %v778, %v777
    %v786 = vpack.c.bf16 %v780, %v779
    %v787 = vld [vmem:[#allocation2 + $0x90] sm:$0xf]
    %v788 = vld [vmem:[#allocation2 + $0x94] sm:$0xf]
    %v789 = vld [vmem:[#allocation2 + $0x98] sm:$0xf]
    %v790 = vld [vmem:[#allocation2 + $0x9c] sm:$0xf]
    %v791 = vld [vmem:[%s2 + $0x50] sm:$0xff]
    %v792 = vld [vmem:[%s2 + $0x58] sm:$0xff]
    %v793 = vld [vmem:[%s2 + $0x60] sm:$0xff]
    %v794 = vld [vmem:[%s2 + $0x68] sm:$0xff]
    %796 = vset.pattern.permute.xlu0 0
    %797 = vperm.xlu0 %796, %v791
    %v798 = vpop.permute.xlu0 %797
    %801 = vset.pattern.permute.xlu0 0
    %802 = vperm.xlu0 %801, %v792
    %v803 = vpop.permute.xlu0 %802
    %806 = vset.pattern.permute.xlu0 0
    %807 = vperm.xlu0 %806, %v793
    %v808 = vpop.permute.xlu0 %807
    %811 = vset.pattern.permute.xlu0 0
    %812 = vperm.xlu0 %811, %v794
    %v813 = vpop.permute.xlu0 %812
    %v819 = vunpack.c.l.b16 %v787
    %v820 = vunpack.c.l.b16 %v788
    %v821 = vunpack.c.l.b16 %v789
    %v822 = vunpack.c.l.b16 %v790
    %v823 = vpack.c.b16 %v820, %v819
    %v824 = vpack.c.b16 %v822, %v821
    %vm825 = vcmask 785408
    %v827 = vsel %vm825, %v823, 0
    %v830 = vsel %vm825, %v824, 0
    %832 = vmatprep.subr.bf16.mxu0 0
    %833 = vmatpush1.bf16.msra.mxu0 %v781
    %834 = vmatprep.subr.bf16.mxu0 0
    %835 = vmatpush1.bf16.msra.mxu0 %v782
    %836 = vmatprep.subr.bf16.mxu0 0
    %837 = vmatpush1.bf16.msra.mxu0 %v783
    %838 = vmatprep.subr.bf16.mxu0 0
    %839 = vmatpush1.bf16.msra.mxu0 %v784
    %840 = vmatprep.subr.bf16.mxu0 0
    %841 = vmatpush1.bf16.msra.mxu0 %v785
    %842 = vmatprep.subr.bf16.mxu0 0
    %843 = vmatpush1.bf16.msra.mxu0 %v786
    %844 = vmatprep.subr.bf16.mxu0 0
    %845 = vmatpush1.bf16.msra.mxu0 0
    %846 = vmatprep.subr.bf16.mxu0 0
    %847 = vmatpush1.bf16.msra.mxu0 0
    %848 = vmatprep.subr.bf16.mxu0 0
    %849 = vmatpush1.bf16.msra.mxu0 0
    %850 = vmatprep.subr.bf16.mxu0 0
    %851 = vmatpush1.bf16.msra.mxu0 0
    %852 = vmatprep.subr.bf16.mxu0 0
    %853 = vmatpush1.bf16.msra.mxu0 0
    %854 = vmatprep.subr.bf16.mxu0 0
    %855 = vmatpush1.bf16.msra.mxu0 0
    %856 = vmatprep.subr.bf16.mxu0 0
    %857 = vmatpush1.bf16.msra.mxu0 0
    %858 = vmatprep.subr.bf16.mxu0 0
    %859 = vmatpush1.bf16.msra.mxu0 0
    %860 = vmatprep.subr.bf16.mxu0 0
    %861 = vmatpush1.bf16.msra.mxu0 0
    %862 = vmatprep.subr.bf16.mxu0 0
    %863 = vmatpush1.bf16.msra.mxu0 0
    %864 = vmatprep.mubr.bf16.mxu0 0
    %865 = vmatmul.mubr.bf16.gmra.mrb[0].mxu0 %v827
    %v866 = vpop.f32.mrb[0].mxu0
    %v867 = vadd.f32 %v798, %v866
    %v868 = vpop.f32.mrb[0].mxu0
    %v869 = vpop.f32.mrb[0].mxu0
    %v870 = vadd.f32 %v803, %v869
    %v871 = vpop.f32.mrb[0].mxu0
    %872 = vmatprep.mubr.bf16.mxu0 0
    %873 = vmatmul.mubr.bf16.gmra.mrb[0].mxu0 %v830
    %v874 = vpop.f32.mrb[0].mxu0
    %v875 = vadd.f32 %v808, %v874
    %v876 = vpop.f32.mrb[0].mxu0
    %v877 = vpop.f32.mrb[0].mxu0
    %v878 = vadd.f32 %v813, %v877
    %v879 = vpop.f32.mrb[0].mxu0
    %880 = vdwg.mxu0
    %v881 = vmax.f32 %v867, 0.0
    %v882 = vmax.f32 %v870, 0.0
    %v883 = vmax.f32 %v875, 0.0
    %v884 = vmax.f32 %v878, 0.0
    %v885 = vld [vmem:[#allocation2 + $0xa0] sm:$0xf]
    %v886 = vld [vmem:[#allocation2 + $0xa4] sm:$0xf]
    %v887 = vld [vmem:[#allocation2 + $0xa8] sm:$0xf]
    %v888 = vld [vmem:[#allocation2 + $0xac] sm:$0xf]
    %v889 = vld [vmem:[#allocation2 + $0xb0] sm:$0xf]
    %v890 = vld [vmem:[#allocation2 + $0xb4] sm:$0xf]
    %v891 = vld [vmem:[#allocation2 + $0xb8] sm:$0xf]
    %v892 = vld [vmem:[#allocation2 + $0xbc] sm:$0xf]
    %v893 = vpack.c.bf16 %v882, %v881
    %v894 = vpack.c.bf16 %v884, %v883
    %v903 = vunpack.c.l.b16 %v885
    %v904 = vunpack.c.l.b16 %v886
    %v905 = vunpack.c.l.b16 %v887
    %v906 = vunpack.c.l.b16 %v888
    %v907 = vunpack.c.l.b16 %v889
    %v908 = vunpack.c.l.b16 %v890
    %v909 = vunpack.c.l.b16 %v891
    %v910 = vunpack.c.l.b16 %v892
    %v911 = vpack.c.b16 %v904, %v903
    %v912 = vpack.c.b16 %v906, %v905
    %v913 = vpack.c.b16 %v908, %v907
    %v914 = vpack.c.b16 %v910, %v909
    %vm915 = vcmask 261120
    %v917 = vsel %vm915, %v911, 0
    %v920 = vsel %vm915, %v912, 0
    %v923 = vsel %vm915, %v913, 0
    %v926 = vsel %vm915, %v914, 0
    %928 = vmatprep.subr.bf16.mxu0 0
    %929 = vmatpush1.bf16.msra.mxu0 %v893
    %930 = vmatprep.subr.bf16.mxu0 0
    %931 = vmatpush1.bf16.msra.mxu0 %v894
    %932 = vmatprep.subr.bf16.mxu0 0
    %933 = vmatpush1.bf16.msra.mxu0 0
    %934 = vmatprep.subr.bf16.mxu0 0
    %935 = vmatpush1.bf16.msra.mxu0 0
    %936 = vmatprep.subr.bf16.mxu0 0
    %937 = vmatpush1.bf16.msra.mxu0 0
    %938 = vmatprep.subr.bf16.mxu0 0
    %939 = vmatpush1.bf16.msra.mxu0 0
    %940 = vmatprep.subr.bf16.mxu0 0
    %941 = vmatpush1.bf16.msra.mxu0 0
    %942 = vmatprep.subr.bf16.mxu0 0
    %943 = vmatpush1.bf16.msra.mxu0 0
    %944 = vmatprep.subr.bf16.mxu0 0
    %945 = vmatpush1.bf16.msra.mxu0 0
    %946 = vmatprep.subr.bf16.mxu0 0
    %947 = vmatpush1.bf16.msra.mxu0 0
    %948 = vmatprep.subr.bf16.mxu0 0
    %949 = vmatpush1.bf16.msra.mxu0 0
    %950 = vmatprep.subr.bf16.mxu0 0
    %951 = vmatpush1.bf16.msra.mxu0 0
    %952 = vmatprep.subr.bf16.mxu0 0
    %953 = vmatpush1.bf16.msra.mxu0 0
    %954 = vmatprep.subr.bf16.mxu0 0
    %955 = vmatpush1.bf16.msra.mxu0 0
    %956 = vmatprep.subr.bf16.mxu0 0
    %957 = vmatpush1.bf16.msra.mxu0 0
    %958 = vmatprep.subr.bf16.mxu0 0
    %959 = vmatpush1.bf16.msra.mxu0 0
    %960 = vmatprep.mubr.bf16.mxu0 0
    %961 = vmatmul.mubr.bf16.gmra.mrb[0].mxu0 %v917
    %v962 = vpop.f32.mrb[0].mxu0
    %v963 = vadd.f32 0.0, %v962
    %v964 = vpop.f32.mrb[0].mxu0
    %v965 = vpop.f32.mrb[0].mxu0
    %v966 = vadd.f32 0.0, %v965
    %v967 = vpop.f32.mrb[0].mxu0
    %968 = vmatprep.mubr.bf16.mxu0 0
    %969 = vmatmul.mubr.bf16.gmra.mrb[0].mxu0 %v920
    %v970 = vpop.f32.mrb[0].mxu0
    %v971 = vadd.f32 0.0, %v970
    %v972 = vpop.f32.mrb[0].mxu0
    %v973 = vpop.f32.mrb[0].mxu0
    %v974 = vadd.f32 0.0, %v973
    %v975 = vpop.f32.mrb[0].mxu0
    %976 = vmatprep.mubr.bf16.mxu0 0
    %977 = vmatmul.mubr.bf16.gmra.mrb[0].mxu0 %v923
    %v978 = vpop.f32.mrb[0].mxu0
    %v979 = vadd.f32 0.0, %v978
    %v980 = vpop.f32.mrb[0].mxu0
    %v981 = vpop.f32.mrb[0].mxu0
    %v982 = vadd.f32 0.0, %v981
    %v983 = vpop.f32.mrb[0].mxu0
    %984 = vmatprep.mubr.bf16.mxu0 0
    %985 = vmatmul.mubr.bf16.gmra.mrb[0].mxu0 %v926
    %v986 = vpop.f32.mrb[0].mxu0
    %v987 = vadd.f32 0.0, %v986
    %v988 = vpop.f32.mrb[0].mxu0
    %v989 = vpop.f32.mrb[0].mxu0
    %v990 = vadd.f32 0.0, %v989
    %v991 = vpop.f32.mrb[0].mxu0
    %992 = vdwg.mxu0
    %997 = vrot.lane.b32.xlu0 %v979, 18
    %v998 = vpop.permute.xlu0 %997
    %999 = vrot.lane.b32.xlu0 %v982, 18
    %v1000 = vpop.permute.xlu0 %999
    %1001 = vrot.lane.b32.xlu0 %v987, 18
    %v1002 = vpop.permute.xlu0 %1001
    %1003 = vrot.lane.b32.xlu0 %v990, 18
    %v1004 = vpop.permute.xlu0 %1003
    %vm1009 = vcmask 146432
    %v1010 = vsel %vm1009, %v963, %v998
    %v1011 = vsel %vm1009, %v966, %v1000
    %v1012 = vsel %vm1009, %v971, %v1002
    %v1013 = vsel %vm1009, %v974, %v1004
    %v1014 = vld [vmem:[#allocation2 + $0xc0] sm:$0xf]
    %v1015 = vld [vmem:[#allocation2 + $0xc4] sm:$0xf]
    %v1016 = vld [vmem:[#allocation2 + $0xc8] sm:$0xf]
    %v1017 = vld [vmem:[#allocation2 + $0xcc] sm:$0xf]
    %v1018 = vld [vmem:[#allocation2 + $0xd0] sm:$0x3]
    %v1019 = vpack.c.bf16 %v1011, %v1010
    %v1020 = vpack.c.bf16 %v1013, %v1012
    %v1021 = vld [vmem:[%s2 + $0x70] sm:$0xff]
    %v1022 = vld [vmem:[%s2 + $0x78] sm:$0xff]
    %v1023 = vld [vmem:[%s2 + $0x80] sm:$0xff]
    %v1024 = vld [vmem:[%s2 + $0x88] sm:$0xff]
    %1026 = vset.pattern.permute.xlu0 0
    %1027 = vperm.xlu0 %1026, %v1021
    %v1028 = vpop.permute.xlu0 %1027
    %1031 = vset.pattern.permute.xlu0 0
    %1032 = vperm.xlu0 %1031, %v1022
    %v1033 = vpop.permute.xlu0 %1032
    %1036 = vset.pattern.permute.xlu0 0
    %1037 = vperm.xlu0 %1036, %v1023
    %v1038 = vpop.permute.xlu0 %1037
    %1041 = vset.pattern.permute.xlu0 0
    %1042 = vperm.xlu0 %1041, %v1024
    %v1043 = vpop.permute.xlu0 %1042
    %v1050 = vunpack.c.l.b16 %v1014
    %v1051 = vunpack.c.l.b16 %v1015
    %v1052 = vunpack.c.l.b16 %v1016
    %v1053 = vunpack.c.l.b16 %v1017
    %v1054 = vunpack.c.l.b16 %v1018
    %v1055 = vpack.c.b16 %v1051, %v1050
    %v1056 = vpack.c.b16 %v1053, %v1052
    %v1057 = vpack.c.b16 %v1054, %v1054
    %vm1060 = vcmask 293888
    %v1062 = vsel %vm1060, %v1019, 0
    %v1065 = vsel %vm1060, %v1020, 0
    %v1068 = vsel %vm59, %v1057, 0
    %1070 = vmatprep.subr.bf16.mxu0 0
    %1071 = vmatpush1.bf16.msra.mxu0 %v1055
    %1072 = vmatprep.subr.bf16.mxu0 0
    %1073 = vmatpush1.bf16.msra.mxu0 %v1056
    %1074 = vmatprep.subr.bf16.mxu0 0
    %1075 = vmatpush1.bf16.msra.mxu0 %v1068
    %1076 = vmatprep.subr.bf16.mxu0 0
    %1077 = vmatpush1.bf16.msra.mxu0 0
    %1078 = vmatprep.subr.bf16.mxu0 0
    %1079 = vmatpush1.bf16.msra.mxu0 0
    %1080 = vmatprep.subr.bf16.mxu0 0
    %1081 = vmatpush1.bf16.msra.mxu0 0
    %1082 = vmatprep.subr.bf16.mxu0 0
    %1083 = vmatpush1.bf16.msra.mxu0 0
    %1084 = vmatprep.subr.bf16.mxu0 0
    %1085 = vmatpush1.bf16.msra.mxu0 0
    %1086 = vmatprep.subr.bf16.mxu0 0
    %1087 = vmatpush1.bf16.msra.mxu0 0
    %1088 = vmatprep.subr.bf16.mxu0 0
    %1089 = vmatpush1.bf16.msra.mxu0 0
    %1090 = vmatprep.subr.bf16.mxu0 0
    %1091 = vmatpush1.bf16.msra.mxu0 0
    %1092 = vmatprep.subr.bf16.mxu0 0
    %1093 = vmatpush1.bf16.msra.mxu0 0
    %1094 = vmatprep.subr.bf16.mxu0 0
    %1095 = vmatpush1.bf16.msra.mxu0 0
    %1096 = vmatprep.subr.bf16.mxu0 0
    %1097 = vmatpush1.bf16.msra.mxu0 0
    %1098 = vmatprep.subr.bf16.mxu0 0
    %1099 = vmatpush1.bf16.msra.mxu0 0
    %1100 = vmatprep.subr.bf16.mxu0 0
    %1101 = vmatpush1.bf16.msra.mxu0 0
    %1102 = vmatprep.mubr.bf16.mxu0 0
    %1103 = vmatmul.mubr.bf16.gmra.mrb[0].mxu0 %v1062
    %v1104 = vpop.f32.mrb[0].mxu0
    %v1105 = vadd.f32 %v1028, %v1104
    %v1106 = vpop.f32.mrb[0].mxu0
    %v1107 = vpop.f32.mrb[0].mxu0
    %v1108 = vadd.f32 %v1033, %v1107
    %v1109 = vpop.f32.mrb[0].mxu0
    %1110 = vmatprep.mubr.bf16.mxu0 0
    %1111 = vmatmul.mubr.bf16.gmra.mrb[0].mxu0 %v1065
    %v1112 = vpop.f32.mrb[0].mxu0
    %v1113 = vadd.f32 %v1038, %v1112
    %v1114 = vpop.f32.mrb[0].mxu0
    %v1115 = vpop.f32.mrb[0].mxu0
    %v1116 = vadd.f32 %v1043, %v1115
    %v1117 = vpop.f32.mrb[0].mxu0
    %1118 = vdwg.mxu0
    %1121 = vrot.lane.b32.xlu0 %v494, 124
    %v1122 = vpop.permute.xlu0 %1121
    %1123 = vrot.lane.b32.xlu0 %v495, 124
    %v1124 = vpop.permute.xlu0 %1123
    %1127 = vrot.lane.b32.xlu0 %v494, 114
    %v1128 = vpop.permute.xlu0 %1127
    %1129 = vrot.lane.b32.xlu0 %v495, 114
    %v1130 = vpop.permute.xlu0 %1129
    %vm1133 = vcmask 130048
    %v1134 = vsel %vm1133, %v1122, %v1128
    %v1135 = vsel %vm1133, %v1124, %v1130
    %1136 = vrot.lane.b32.xlu0 %v494, 123
    %v1137 = vpop.permute.xlu0 %1136
    %1138 = vrot.lane.b32.xlu0 %v495, 123
    %v1139 = vpop.permute.xlu0 %1138
    %1142 = vrot.lane.b32.xlu0 %v494, 113
    %v1143 = vpop.permute.xlu0 %1142
    %1144 = vrot.lane.b32.xlu0 %v495, 113
    %v1145 = vpop.permute.xlu0 %1144
    %v1148 = vsel %vm1133, %v1137, %v1143
    %v1149 = vsel %vm1133, %v1139, %v1145
    %1150 = vrot.lane.b32.xlu0 %v494, 122
    %v1151 = vpop.permute.xlu0 %1150
    %1152 = vrot.lane.b32.xlu0 %v495, 122
    %v1153 = vpop.permute.xlu0 %1152
    %1156 = vrot.lane.b32.xlu0 %v494, 112
    %v1157 = vpop.permute.xlu0 %1156
    %1158 = vrot.lane.b32.xlu0 %v495, 112
    %v1159 = vpop.permute.xlu0 %1158
    %v1162 = vsel %vm1133, %v1151, %v1157
    %v1163 = vsel %vm1133, %v1153, %v1159
    %v1164 = vpack.c.bf16 %v1135, %v1134
    %v1165 = vpack.c.bf16 %v1149, %v1148
    %v1166 = vpack.c.bf16 %v1163, %v1162
    %v1167 = vld [vmem:[#allocation2 + $0xd8] sm:$0xf]
    %v1168 = vld [vmem:[#allocation2 + $0xdc] sm:$0xf]
    %1173 = vrot.lane.b32.xlu0 %v1105, 126
    %v1174 = vpop.permute.xlu0 %1173
    %1175 = vrot.lane.b32.xlu0 %v1108, 126
    %v1176 = vpop.permute.xlu0 %1175
    %1177 = vrot.lane.b32.xlu0 %v1113, 126
    %v1178 = vpop.permute.xlu0 %1177
    %1179 = vrot.lane.b32.xlu0 %v1116, 126
    %v1180 = vpop.permute.xlu0 %1179
    %v1185 = vsel %vm1133, %v1105, %v1174
    %v1186 = vsel %vm1133, %v1108, %v1176
    %v1187 = vsel %vm1133, %v1113, %v1178
    %v1188 = vsel %vm1133, %v1116, %v1180
    %1189 = vrot.lane.b32.xlu0 %v1105, 127
    %v1190 = vpop.permute.xlu0 %1189
    %1191 = vrot.lane.b32.xlu0 %v1108, 127
    %v1192 = vpop.permute.xlu0 %1191
    %1193 = vrot.lane.b32.xlu0 %v1113, 127
    %v1194 = vpop.permute.xlu0 %1193
    %1195 = vrot.lane.b32.xlu0 %v1116, 127
    %v1196 = vpop.permute.xlu0 %1195
    %1201 = vrot.lane.b32.xlu0 %v1105, 125
    %v1202 = vpop.permute.xlu0 %1201
    %1203 = vrot.lane.b32.xlu0 %v1108, 125
    %v1204 = vpop.permute.xlu0 %1203
    %1205 = vrot.lane.b32.xlu0 %v1113, 125
    %v1206 = vpop.permute.xlu0 %1205
    %1207 = vrot.lane.b32.xlu0 %v1116, 125
    %v1208 = vpop.permute.xlu0 %1207
    %v1213 = vsel %vm1133, %v1190, %v1202
    %v1214 = vsel %vm1133, %v1192, %v1204
    %v1215 = vsel %vm1133, %v1194, %v1206
    %v1216 = vsel %vm1133, %v1196, %v1208
    %1217 = vrot.lane.b32.xlu0 %v1105, 124
    %v1218 = vpop.permute.xlu0 %1217
    %1219 = vrot.lane.b32.xlu0 %v1108, 124
    %v1220 = vpop.permute.xlu0 %1219
    %1221 = vrot.lane.b32.xlu0 %v1113, 124
    %v1222 = vpop.permute.xlu0 %1221
    %1223 = vrot.lane.b32.xlu0 %v1116, 124
    %v1224 = vpop.permute.xlu0 %1223
    %v1229 = vsel %vm1133, %v1174, %v1218
    %v1230 = vsel %vm1133, %v1176, %v1220
    %v1231 = vsel %vm1133, %v1178, %v1222
    %v1232 = vsel %vm1133, %v1180, %v1224
    %v1233 = vpack.c.bf16 %v1186, %v1185
    %v1234 = vpack.c.bf16 %v1188, %v1187
    %v1235 = vpack.c.bf16 %v1214, %v1213
    %v1236 = vpack.c.bf16 %v1216, %v1215
    %v1237 = vpack.c.bf16 %v1230, %v1229
    %v1238 = vpack.c.bf16 %v1232, %v1231
    %v1239 = vld [vmem:[#allocation2 + $0xe0] sm:$0xf]
    %v1240 = vld [vmem:[#allocation2 + $0xe4] sm:$0xf]
    %v1243 = vunpack.c.l.b16 %v1239
    %v1244 = vunpack.c.l.b16 %v1240
    %v1245 = vpack.c.b16 %v1244, %v1243
    %v1247 = vsel %vm825, %v1245, 0
    %1249 = vmatprep.subr.bf16.mxu0 0
    %1250 = vmatpush1.bf16.msra.mxu0 %v1233
    %1251 = vmatprep.subr.bf16.mxu0 0
    %1252 = vmatpush1.bf16.msra.mxu0 %v1234
    %1253 = vmatprep.subr.bf16.mxu0 0
    %1254 = vmatpush1.bf16.msra.mxu0 %v1235
    %1255 = vmatprep.subr.bf16.mxu0 0
    %1256 = vmatpush1.bf16.msra.mxu0 %v1236
    %1257 = vmatprep.subr.bf16.mxu0 0
    %1258 = vmatpush1.bf16.msra.mxu0 %v1237
    %1259 = vmatprep.subr.bf16.mxu0 0
    %1260 = vmatpush1.bf16.msra.mxu0 %v1238
    %1261 = vmatprep.subr.bf16.mxu0 0
    %1262 = vmatpush1.bf16.msra.mxu0 0
    %1263 = vmatprep.subr.bf16.mxu0 0
    %1264 = vmatpush1.bf16.msra.mxu0 0
    %1265 = vmatprep.subr.bf16.mxu0 0
    %1266 = vmatpush1.bf16.msra.mxu0 0
    %1267 = vmatprep.subr.bf16.mxu0 0
    %1268 = vmatpush1.bf16.msra.mxu0 0
    %1269 = vmatprep.subr.bf16.mxu0 0
    %1270 = vmatpush1.bf16.msra.mxu0 0
    %1271 = vmatprep.subr.bf16.mxu0 0
    %1272 = vmatpush1.bf16.msra.mxu0 0
    %1273 = vmatprep.subr.bf16.mxu0 0
    %1274 = vmatpush1.bf16.msra.mxu0 0
    %1275 = vmatprep.subr.bf16.mxu0 0
    %1276 = vmatpush1.bf16.msra.mxu0 0
    %1277 = vmatprep.subr.bf16.mxu0 0
    %1278 = vmatpush1.bf16.msra.mxu0 0
    %1279 = vmatprep.subr.bf16.mxu0 0
    %1280 = vmatpush1.bf16.msra.mxu0 0
    %1281 = vmatprep.mubr.bf16.mxu0 0
    %1282 = vmatmul.mubr.bf16.gmra.mrb[0].mxu0 %v1247
    %v1283 = vpop.f32.mrb[0].mxu0
    %v1284 = vadd.f32 0.0, %v1283
    %v1285 = vpop.f32.mrb[0].mxu0
    %v1286 = vpop.f32.mrb[0].mxu0
    %v1287 = vadd.f32 0.0, %v1286
    %v1288 = vpop.f32.mrb[0].mxu0
    %1289 = vdwg.mxu0
    %v1292 = vunpack.c.l.b16 %v1167
    %v1293 = vunpack.c.l.b16 %v1168
    %v1294 = vpack.c.b16 %v1293, %v1292
    %v1296 = vsel %vm449, %v1294, 0
    %1298 = vmatprep.subr.bf16.mxu0 0
    %1299 = vmatpush1.bf16.msra.mxu0 %v1164
    %1300 = vmatprep.subr.bf16.mxu0 0
    %1301 = vmatpush1.bf16.msra.mxu0 %v1165
    %1302 = vmatprep.subr.bf16.mxu0 0
    %1303 = vmatpush1.bf16.msra.mxu0 %v1166
    %1304 = vmatprep.subr.bf16.mxu0 0
    %1305 = vmatpush1.bf16.msra.mxu0 0
    %1306 = vmatprep.subr.bf16.mxu0 0
    %1307 = vmatpush1.bf16.msra.mxu0 0
    %1308 = vmatprep.subr.bf16.mxu0 0
    %1309 = vmatpush1.bf16.msra.mxu0 0
    %1310 = vmatprep.subr.bf16.mxu0 0
    %1311 = vmatpush1.bf16.msra.mxu0 0
    %1312 = vmatprep.subr.bf16.mxu0 0
    %1313 = vmatpush1.bf16.msra.mxu0 0
    %1314 = vmatprep.subr.bf16.mxu0 0
    %1315 = vmatpush1.bf16.msra.mxu0 0
    %1316 = vmatprep.subr.bf16.mxu0 0
    %1317 = vmatpush1.bf16.msra.mxu0 0
    %1318 = vmatprep.subr.bf16.mxu0 0
    %1319 = vmatpush1.bf16.msra.mxu0 0
    %1320 = vmatprep.subr.bf16.mxu0 0
    %1321 = vmatpush1.bf16.msra.mxu0 0
    %1322 = vmatprep.subr.bf16.mxu0 0
    %1323 = vmatpush1.bf16.msra.mxu0 0
    %1324 = vmatprep.subr.bf16.mxu0 0
    %1325 = vmatpush1.bf16.msra.mxu0 0
    %1326 = vmatprep.subr.bf16.mxu0 0
    %1327 = vmatpush1.bf16.msra.mxu0 0
    %1328 = vmatprep.subr.bf16.mxu0 0
    %1329 = vmatpush1.bf16.msra.mxu0 0
    %1330 = vmatprep.mubr.bf16.mxu0 0
    %1331 = vmatmul.mubr.bf16.gmra.mrb[0].mxu0 %v1296
    %v1332 = vpop.f32.mrb[0].mxu0
    %v1333 = vadd.f32 %v1284, %v1332
    %v1334 = vpop.f32.mrb[0].mxu0
    %v1335 = vpop.f32.mrb[0].mxu0
    %v1336 = vadd.f32 %v1287, %v1335
    %v1337 = vpop.f32.mrb[0].mxu0
    %1338 = vdwg.mxu0
    %v1339 = vld [vmem:[%s2 + $0x90] sm:$0xff]
    %v1340 = vld [vmem:[%s2 + $0x98] sm:$0xff]
    %1342 = vset.pattern.permute.xlu0 0
    %1343 = vperm.xlu0 %1342, %v1339
    %v1344 = vpop.permute.xlu0 %1343
    %1347 = vset.pattern.permute.xlu0 0
    %1348 = vperm.xlu0 %1347, %v1340
    %v1349 = vpop.permute.xlu0 %1348
    %v1351 = vadd.f32 %v1333, %v1344
    %v1352 = vadd.f32 %v1336, %v1349
    %v1353 = vmax.f32 %v1351, 0.0
    %v1354 = vmax.f32 %v1352, 0.0
    %1357 = vrot.lane.b32.xlu0 %v1353, 126
    %v1358 = vpop.permute.xlu0 %1357
    %1359 = vrot.lane.b32.xlu0 %v1354, 126
    %v1360 = vpop.permute.xlu0 %1359
    %vm1363 = vcmask 113664
    %v1364 = vsel %vm1363, %v1353, %v1358
    %v1365 = vsel %vm1363, %v1354, %v1360
    %1366 = vrot.lane.b32.xlu0 %v1353, 127
    %v1367 = vpop.permute.xlu0 %1366
    %1368 = vrot.lane.b32.xlu0 %v1354, 127
    %v1369 = vpop.permute.xlu0 %1368
    %1372 = vrot.lane.b32.xlu0 %v1353, 125
    %v1373 = vpop.permute.xlu0 %1372
    %1374 = vrot.lane.b32.xlu0 %v1354, 125
    %v1375 = vpop.permute.xlu0 %1374
    %v1378 = vsel %vm1363, %v1367, %v1373
    %v1379 = vsel %vm1363, %v1369, %v1375
    %1380 = vrot.lane.b32.xlu0 %v1353, 124
    %v1381 = vpop.permute.xlu0 %1380
    %1382 = vrot.lane.b32.xlu0 %v1354, 124
    %v1383 = vpop.permute.xlu0 %1382
    %v1386 = vsel %vm1363, %v1358, %v1381
    %v1387 = vsel %vm1363, %v1360, %v1383
    %v1388 = vpack.c.bf16 %v1365, %v1364
    %v1389 = vpack.c.bf16 %v1379, %v1378
    %v1390 = vpack.c.bf16 %v1387, %v1386
    %v1391 = vld [vmem:[#allocation2 + $0xe8] sm:$0xf]
    %v1392 = vld [vmem:[#allocation2 + $0xec] sm:$0xf]
    %v1393 = vld [vmem:[%s2 + $0xa0] sm:$0xff]
    %v1394 = vld [vmem:[%s2 + $0xa8] sm:$0xff]
    %1396 = vset.pattern.permute.xlu0 0
    %1397 = vperm.xlu0 %1396, %v1393
    %v1398 = vpop.permute.xlu0 %1397
    %1401 = vset.pattern.permute.xlu0 0
    %1402 = vperm.xlu0 %1401, %v1394
    %v1403 = vpop.permute.xlu0 %1402
    %v1407 = vunpack.c.l.b16 %v1391
    %v1408 = vunpack.c.l.b16 %v1392
    %v1409 = vpack.c.b16 %v1408, %v1407
    %v1411 = vsel %vm449, %v1409, 0
    %1413 = vmatprep.subr.bf16.mxu0 0
    %1414 = vmatpush1.bf16.msra.mxu0 %v1388
    %1415 = vmatprep.subr.bf16.mxu0 0
    %1416 = vmatpush1.bf16.msra.mxu0 %v1389
    %1417 = vmatprep.subr.bf16.mxu0 0
    %1418 = vmatpush1.bf16.msra.mxu0 %v1390
    %1419 = vmatprep.subr.bf16.mxu0 0
    %1420 = vmatpush1.bf16.msra.mxu0 0
    %1421 = vmatprep.subr.bf16.mxu0 0
    %1422 = vmatpush1.bf16.msra.mxu0 0
    %1423 = vmatprep.subr.bf16.mxu0 0
    %1424 = vmatpush1.bf16.msra.mxu0 0
    %1425 = vmatprep.subr.bf16.mxu0 0
    %1426 = vmatpush1.bf16.msra.mxu0 0
    %1427 = vmatprep.subr.bf16.mxu0 0
    %1428 = vmatpush1.bf16.msra.mxu0 0
    %1429 = vmatprep.subr.bf16.mxu0 0
    %1430 = vmatpush1.bf16.msra.mxu0 0
    %1431 = vmatprep.subr.bf16.mxu0 0
    %1432 = vmatpush1.bf16.msra.mxu0 0
    %1433 = vmatprep.subr.bf16.mxu0 0
    %1434 = vmatpush1.bf16.msra.mxu0 0
    %1435 = vmatprep.subr.bf16.mxu0 0
    %1436 = vmatpush1.bf16.msra.mxu0 0
    %1437 = vmatprep.subr.bf16.mxu0 0
    %1438 = vmatpush1.bf16.msra.mxu0 0
    %1439 = vmatprep.subr.bf16.mxu0 0
    %1440 = vmatpush1.bf16.msra.mxu0 0
    %1441 = vmatprep.subr.bf16.mxu0 0
    %1442 = vmatpush1.bf16.msra.mxu0 0
    %1443 = vmatprep.subr.bf16.mxu0 0
    %1444 = vmatpush1.bf16.msra.mxu0 0
    %1445 = vmatprep.mubr.bf16.mxu0 0
    %1446 = vmatmul.mubr.bf16.gmra.mrb[0].mxu0 %v1411
    %v1447 = vpop.f32.mrb[0].mxu0
    %v1448 = vadd.f32 %v1398, %v1447
    %v1449 = vpop.f32.mrb[0].mxu0
    %v1450 = vpop.f32.mrb[0].mxu0
    %v1451 = vadd.f32 %v1403, %v1450
    %v1452 = vpop.f32.mrb[0].mxu0
    %1453 = vdwg.mxu0
    %v1454 = vmax.f32 %v1448, 0.0
    %v1455 = vmax.f32 %v1451, 0.0
    %v1456 = vld [vmem:[#allocation2 + $0xf0] sm:$0xf]
    %v1457 = vld [vmem:[#allocation2 + $0xf4] sm:$0xf]
    %v1458 = vld [vmem:[#allocation2 + $0xf8] sm:$0xf]
    %v1459 = vld [vmem:[#allocation2 + $0xfc] sm:$0xf]
    %v1460 = vpack.c.bf16 %v1455, %v1454
    %v1465 = vunpack.c.l.b16 %v1456
    %v1466 = vunpack.c.l.b16 %v1457
    %v1467 = vunpack.c.l.b16 %v1458
    %v1468 = vunpack.c.l.b16 %v1459
    %v1469 = vpack.c.b16 %v1466, %v1465
    %v1470 = vpack.c.b16 %v1468, %v1467
    %v1472 = vsel %vm1133, %v1469, 0
    %v1475 = vsel %vm1133, %v1470, 0
    %1477 = vmatprep.subr.bf16.mxu0 0
    %1478 = vmatpush1.bf16.msra.mxu0 %v1460
    %1479 = vmatprep.subr.bf16.mxu0 0
    %1480 = vmatpush1.bf16.msra.mxu0 0
    %1481 = vmatprep.subr.bf16.mxu0 0
    %1482 = vmatpush1.bf16.msra.mxu0 0
    %1483 = vmatprep.subr.bf16.mxu0 0
    %1484 = vmatpush1.bf16.msra.mxu0 0
    %1485 = vmatprep.subr.bf16.mxu0 0
    %1486 = vmatpush1.bf16.msra.mxu0 0
    %1487 = vmatprep.subr.bf16.mxu0 0
    %1488 = vmatpush1.bf16.msra.mxu0 0
    %1489 = vmatprep.subr.bf16.mxu0 0
    %1490 = vmatpush1.bf16.msra.mxu0 0
    %1491 = vmatprep.subr.bf16.mxu0 0
    %1492 = vmatpush1.bf16.msra.mxu0 0
    %1493 = vmatprep.subr.bf16.mxu0 0
    %1494 = vmatpush1.bf16.msra.mxu0 0
    %1495 = vmatprep.subr.bf16.mxu0 0
    %1496 = vmatpush1.bf16.msra.mxu0 0
    %1497 = vmatprep.subr.bf16.mxu0 0
    %1498 = vmatpush1.bf16.msra.mxu0 0
    %1499 = vmatprep.subr.bf16.mxu0 0
    %1500 = vmatpush1.bf16.msra.mxu0 0
    %1501 = vmatprep.subr.bf16.mxu0 0
    %1502 = vmatpush1.bf16.msra.mxu0 0
    %1503 = vmatprep.subr.bf16.mxu0 0
    %1504 = vmatpush1.bf16.msra.mxu0 0
    %1505 = vmatprep.subr.bf16.mxu0 0
    %1506 = vmatpush1.bf16.msra.mxu0 0
    %1507 = vmatprep.subr.bf16.mxu0 0
    %1508 = vmatpush1.bf16.msra.mxu0 0
    %1509 = vmatprep.mubr.bf16.mxu0 0
    %1510 = vmatmul.mubr.bf16.gmra.mrb[0].mxu0 %v1472
    %v1511 = vpop.f32.mrb[0].mxu0
    %v1512 = vadd.f32 0.0, %v1511
    %v1513 = vpop.f32.mrb[0].mxu0
    %v1514 = vpop.f32.mrb[0].mxu0
    %v1515 = vadd.f32 0.0, %v1514
    %v1516 = vpop.f32.mrb[0].mxu0
    %1517 = vmatprep.mubr.bf16.mxu0 0
    %1518 = vmatmul.mubr.bf16.gmra.mrb[0].mxu0 %v1475
    %v1519 = vpop.f32.mrb[0].mxu0
    %v1520 = vadd.f32 0.0, %v1519
    %v1521 = vpop.f32.mrb[0].mxu0
    %v1522 = vpop.f32.mrb[0].mxu0
    %v1523 = vadd.f32 0.0, %v1522
    %v1524 = vpop.f32.mrb[0].mxu0
    %1525 = vdwg.mxu0
    %1528 = vrot.lane.b32.xlu0 %v1520, 28
    %v1529 = vpop.permute.xlu0 %1528
    %1530 = vrot.lane.b32.xlu0 %v1523, 28
    %v1531 = vpop.permute.xlu0 %1530
    %v1534 = vsel %vm311, %v1512, %v1529
    %v1535 = vsel %vm311, %v1515, %v1531
    %v1536 = vld [vmem:[#allocation2 + $0x100] sm:$0xf]
    %v1537 = vld [vmem:[#allocation2 + $0x104] sm:$0xf]
    %v1538 = vld [vmem:[#allocation2 + $0x108] sm:$0xf]
    %v1539 = vld [vmem:[#allocation2 + $0x10c] sm:$0xf]
    %v1540 = vld [vmem:[#allocation2 + $0x110] sm:$0xf]
    %v1541 = vld [vmem:[#allocation2 + $0x114] sm:$0xf]
    %v1542 = vld [vmem:[#allocation2 + $0x118] sm:$0xf]
    %v1543 = vpack.c.bf16 %v1535, %v1534
    %v1544 = vld [vmem:[%s2 + $0xb0] sm:$0xff]
    %v1545 = vld [vmem:[%s2 + $0xb8] sm:$0xff]
    %1547 = vset.pattern.permute.xlu0 0
    %1548 = vperm.xlu0 %1547, %v1544
    %v1549 = vpop.permute.xlu0 %1548
    %1552 = vset.pattern.permute.xlu0 0
    %1553 = vperm.xlu0 %1552, %v1545
    %v1554 = vpop.permute.xlu0 %1553
    %v1563 = vunpack.c.l.b16 %v1536
    %v1564 = vunpack.c.l.b16 %v1537
    %v1565 = vunpack.c.l.b16 %v1538
    %v1566 = vunpack.c.l.b16 %v1539
    %v1567 = vunpack.c.l.b16 %v1540
    %v1568 = vunpack.c.l.b16 %v1541
    %v1569 = vunpack.c.l.b16 %v1542
    %v1570 = vpack.c.b16 %v1564, %v1563
    %v1571 = vpack.c.b16 %v1566, %v1565
    %v1572 = vpack.c.b16 %v1568, %v1567
    %v1573 = vpack.c.b16 %v1569, %v1569
    %vm1577 = vcmask 457728
    %v1579 = vsel %vm1577, %v1543, 0
    %v1582 = vsel %vm149, %v1573, 0
    %1584 = vmatprep.subr.bf16.mxu0 0
    %1585 = vmatpush1.bf16.msra.mxu0 %v1570
    %1586 = vmatprep.subr.bf16.mxu0 0
    %1587 = vmatpush1.bf16.msra.mxu0 %v1571
    %1588 = vmatprep.subr.bf16.mxu0 0
    %1589 = vmatpush1.bf16.msra.mxu0 %v1572
    %1590 = vmatprep.subr.bf16.mxu0 0
    %1591 = vmatpush1.bf16.msra.mxu0 %v1582
    %1592 = vmatprep.subr.bf16.mxu0 0
    %1593 = vmatpush1.bf16.msra.mxu0 0
    %1594 = vmatprep.subr.bf16.mxu0 0
    %1595 = vmatpush1.bf16.msra.mxu0 0
    %1596 = vmatprep.subr.bf16.mxu0 0
    %1597 = vmatpush1.bf16.msra.mxu0 0
    %1598 = vmatprep.subr.bf16.mxu0 0
    %1599 = vmatpush1.bf16.msra.mxu0 0
    %1600 = vmatprep.subr.bf16.mxu0 0
    %1601 = vmatpush1.bf16.msra.mxu0 0
    %1602 = vmatprep.subr.bf16.mxu0 0
    %1603 = vmatpush1.bf16.msra.mxu0 0
    %1604 = vmatprep.subr.bf16.mxu0 0
    %1605 = vmatpush1.bf16.msra.mxu0 0
    %1606 = vmatprep.subr.bf16.mxu0 0
    %1607 = vmatpush1.bf16.msra.mxu0 0
    %1608 = vmatprep.subr.bf16.mxu0 0
    %1609 = vmatpush1.bf16.msra.mxu0 0
    %1610 = vmatprep.subr.bf16.mxu0 0
    %1611 = vmatpush1.bf16.msra.mxu0 0
    %1612 = vmatprep.subr.bf16.mxu0 0
    %1613 = vmatpush1.bf16.msra.mxu0 0
    %1614 = vmatprep.subr.bf16.mxu0 0
    %1615 = vmatpush1.bf16.msra.mxu0 0
    %1616 = vmatprep.mubr.bf16.mxu0 0
    %1617 = vmatmul.mubr.bf16.gmra.mrb[0].mxu0 %v1579
    %v1618 = vpop.f32.mrb[0].mxu0
    %v1619 = vadd.f32 %v1549, %v1618
    %v1620 = vpop.f32.mrb[0].mxu0
    %v1621 = vpop.f32.mrb[0].mxu0
    %v1622 = vadd.f32 %v1554, %v1621
    %v1623 = vpop.f32.mrb[0].mxu0
    %1624 = vdwg.mxu0
    %1626 = vrot.lane.b32.xlu0 %v193, 112
    %v1627 = vpop.permute.xlu0 %1626
    %1629 = vrot.lane.b32.xlu0 %v193, 78
    %v1630 = vpop.permute.xlu0 %1629
    %v1632 = vsel %vm402, %v1627, %v1630
    %1633 = vrot.lane.b32.xlu0 %v193, 111
    %v1634 = vpop.permute.xlu0 %1633
    %1636 = vrot.lane.b32.xlu0 %v193, 77
    %v1637 = vpop.permute.xlu0 %1636
    %v1639 = vsel %vm402, %v1634, %v1637
    %1640 = vrot.lane.b32.xlu0 %v193, 110
    %v1641 = vpop.permute.xlu0 %1640
    %1643 = vrot.lane.b32.xlu0 %v193, 76
    %v1644 = vpop.permute.xlu0 %1643
    %v1646 = vsel %vm402, %v1641, %v1644
    %v1647 = vpack.c.bf16 %v1639, %v1632
    %v1648 = vpack.c.bf16 %v1646, %v1646
    %v1649 = vld [vmem:[#allocation2 + $0x120] sm:$0xf]
    %1652 = vrot.lane.b32.xlu0 %v1619, 126
    %v1653 = vpop.permute.xlu0 %1652
    %1654 = vrot.lane.b32.xlu0 %v1622, 126
    %v1655 = vpop.permute.xlu0 %1654
    %v1658 = vsel %vm402, %v1619, %v1653
    %v1659 = vsel %vm402, %v1622, %v1655
    %1660 = vrot.lane.b32.xlu0 %v1619, 127
    %v1661 = vpop.permute.xlu0 %1660
    %1662 = vrot.lane.b32.xlu0 %v1622, 127
    %v1663 = vpop.permute.xlu0 %1662
    %1666 = vrot.lane.b32.xlu0 %v1619, 125
    %v1667 = vpop.permute.xlu0 %1666
    %1668 = vrot.lane.b32.xlu0 %v1622, 125
    %v1669 = vpop.permute.xlu0 %1668
    %v1672 = vsel %vm402, %v1661, %v1667
    %v1673 = vsel %vm402, %v1663, %v1669
    %1674 = vrot.lane.b32.xlu0 %v1619, 124
    %v1675 = vpop.permute.xlu0 %1674
    %1676 = vrot.lane.b32.xlu0 %v1622, 124
    %v1677 = vpop.permute.xlu0 %1676
    %v1680 = vsel %vm402, %v1653, %v1675
    %v1681 = vsel %vm402, %v1655, %v1677
    %v1682 = vpack.c.bf16 %v1659, %v1658
    %v1683 = vpack.c.bf16 %v1673, %v1672
    %v1684 = vpack.c.bf16 %v1681, %v1680
    %v1685 = vld [vmem:[#allocation2 + $0x128] sm:$0xf]
    %v1687 = vsel %vm449, %v1685, 0
    %1689 = vmatprep.subr.bf16.mxu0 0
    %1690 = vmatpush1.bf16.msra.mxu0 %v1682
    %1691 = vmatprep.subr.bf16.mxu0 0
    %1692 = vmatpush1.bf16.msra.mxu0 %v1683
    %1693 = vmatprep.subr.bf16.mxu0 0
    %1694 = vmatpush1.bf16.msra.mxu0 %v1684
    %1695 = vmatprep.subr.bf16.mxu0 0
    %1696 = vmatpush1.bf16.msra.mxu0 0
    %1697 = vmatprep.subr.bf16.mxu0 0
    %1698 = vmatpush1.bf16.msra.mxu0 0
    %1699 = vmatprep.subr.bf16.mxu0 0
    %1700 = vmatpush1.bf16.msra.mxu0 0
    %1701 = vmatprep.subr.bf16.mxu0 0
    %1702 = vmatpush1.bf16.msra.mxu0 0
    %1703 = vmatprep.subr.bf16.mxu0 0
    %1704 = vmatpush1.bf16.msra.mxu0 0
    %1705 = vmatprep.subr.bf16.mxu0 0
    %1706 = vmatpush1.bf16.msra.mxu0 0
    %1707 = vmatprep.subr.bf16.mxu0 0
    %1708 = vmatpush1.bf16.msra.mxu0 0
    %1709 = vmatprep.subr.bf16.mxu0 0
    %1710 = vmatpush1.bf16.msra.mxu0 0
    %1711 = vmatprep.subr.bf16.mxu0 0
    %1712 = vmatpush1.bf16.msra.mxu0 0
    %1713 = vmatprep.subr.bf16.mxu0 0
    %1714 = vmatpush1.bf16.msra.mxu0 0
    %1715 = vmatprep.subr.bf16.mxu0 0
    %1716 = vmatpush1.bf16.msra.mxu0 0
    %1717 = vmatprep.subr.bf16.mxu0 0
    %1718 = vmatpush1.bf16.msra.mxu0 0
    %1719 = vmatprep.subr.bf16.mxu0 0
    %1720 = vmatpush1.bf16.msra.mxu0 0
    %1721 = vmatprep.mubr.bf16.mxu0 0
    %1722 = vmatmul.mubr.bf16.gmra.mrb[0].mxu0 %v1687
    %v1723 = vpop.f32.mrb[0].mxu0
    %v1724 = vadd.f32 0.0, %v1723
    %v1725 = vpop.f32.mrb[0].mxu0
    %v1726 = vpop.f32.mrb[0].mxu0
    %v1727 = vpop.f32.mrb[0].mxu0
    %1728 = vdwg.mxu0
    %v1730 = vsel %vm145, %v1649, 0
    %v1733 = vsel %vm149, %v1648, 0
    %1735 = vmatprep.subr.bf16.mxu0 0
    %1736 = vmatpush1.bf16.msra.mxu0 %v1647
    %1737 = vmatprep.subr.bf16.mxu0 0
    %1738 = vmatpush1.bf16.msra.mxu0 %v1733
    %1739 = vmatprep.subr.bf16.mxu0 0
    %1740 = vmatpush1.bf16.msra.mxu0 0
    %1741 = vmatprep.subr.bf16.mxu0 0
    %1742 = vmatpush1.bf16.msra.mxu0 0
    %1743 = vmatprep.subr.bf16.mxu0 0
    %1744 = vmatpush1.bf16.msra.mxu0 0
    %1745 = vmatprep.subr.bf16.mxu0 0
    %1746 = vmatpush1.bf16.msra.mxu0 0
    %1747 = vmatprep.subr.bf16.mxu0 0
    %1748 = vmatpush1.bf16.msra.mxu0 0
    %1749 = vmatprep.subr.bf16.mxu0 0
    %1750 = vmatpush1.bf16.msra.mxu0 0
    %1751 = vmatprep.subr.bf16.mxu0 0
    %1752 = vmatpush1.bf16.msra.mxu0 0
    %1753 = vmatprep.subr.bf16.mxu0 0
    %1754 = vmatpush1.bf16.msra.mxu0 0
    %1755 = vmatprep.subr.bf16.mxu0 0
    %1756 = vmatpush1.bf16.msra.mxu0 0
    %1757 = vmatprep.subr.bf16.mxu0 0
    %1758 = vmatpush1.bf16.msra.mxu0 0
    %1759 = vmatprep.subr.bf16.mxu0 0
    %1760 = vmatpush1.bf16.msra.mxu0 0
    %1761 = vmatprep.subr.bf16.mxu0 0
    %1762 = vmatpush1.bf16.msra.mxu0 0
    %1763 = vmatprep.subr.bf16.mxu0 0
    %1764 = vmatpush1.bf16.msra.mxu0 0
    %1765 = vmatprep.subr.bf16.mxu0 0
    %1766 = vmatpush1.bf16.msra.mxu0 0
    %1767 = vmatprep.mubr.bf16.mxu0 0
    %1768 = vmatmul.mubr.bf16.gmra.mrb[0].mxu0 %v1730
    %v1769 = vpop.f32.mrb[0].mxu0
    %v1770 = vadd.f32 %v1724, %v1769
    %v1771 = vpop.f32.mrb[0].mxu0
    %v1772 = vpop.f32.mrb[0].mxu0
    %v1773 = vpop.f32.mrb[0].mxu0
    %1774 = vdwg.mxu0
    %v1775 = vld [vmem:[%s2 + $0xc0] sm:$0xff]
    %1777 = vset.pattern.permute.xlu0 0
    %1778 = vperm.xlu0 %1777, %v1775
    %v1779 = vpop.permute.xlu0 %1778
    %v1781 = vadd.f32 %v1770, %v1779
    %v1782 = vmax.f32 %v1781, 0.0
    %1784 = vrot.lane.b32.xlu0 %v1782, 126
    %v1785 = vpop.permute.xlu0 %1784
    %v1787 = vsel %vm145, %v1782, %v1785
    %1788 = vrot.lane.b32.xlu0 %v1782, 127
    %v1789 = vpop.permute.xlu0 %1788
    %1791 = vrot.lane.b32.xlu0 %v1782, 125
    %v1792 = vpop.permute.xlu0 %1791
    %v1794 = vsel %vm145, %v1789, %v1792
    %1795 = vrot.lane.b32.xlu0 %v1782, 124
    %v1796 = vpop.permute.xlu0 %1795
    %v1798 = vsel %vm145, %v1785, %v1796
    %v1799 = vpack.c.bf16 %v1794, %v1787
    %v1800 = vpack.c.bf16 %v1798, %v1798
    %v1801 = vld [vmem:[#allocation2 + $0x130] sm:$0xf]
    %v1802 = vld [vmem:[%s2 + $0xc8] sm:$0xff]
    %1804 = vset.pattern.permute.xlu0 0
    %1805 = vperm.xlu0 %1804, %v1802
    %v1806 = vpop.permute.xlu0 %1805
    %v1809 = vsel %vm145, %v1801, 0
    %v1812 = vsel %vm149, %v1800, 0
    %1814 = vmatprep.subr.bf16.mxu0 0
    %1815 = vmatpush1.bf16.msra.mxu0 %v1799
    %1816 = vmatprep.subr.bf16.mxu0 0
    %1817 = vmatpush1.bf16.msra.mxu0 %v1812
    %1818 = vmatprep.subr.bf16.mxu0 0
    %1819 = vmatpush1.bf16.msra.mxu0 0
    %1820 = vmatprep.subr.bf16.mxu0 0
    %1821 = vmatpush1.bf16.msra.mxu0 0
    %1822 = vmatprep.subr.bf16.mxu0 0
    %1823 = vmatpush1.bf16.msra.mxu0 0
    %1824 = vmatprep.subr.bf16.mxu0 0
    %1825 = vmatpush1.bf16.msra.mxu0 0
    %1826 = vmatprep.subr.bf16.mxu0 0
    %1827 = vmatpush1.bf16.msra.mxu0 0
    %1828 = vmatprep.subr.bf16.mxu0 0
    %1829 = vmatpush1.bf16.msra.mxu0 0
    %1830 = vmatprep.subr.bf16.mxu0 0
    %1831 = vmatpush1.bf16.msra.mxu0 0
    %1832 = vmatprep.subr.bf16.mxu0 0
    %1833 = vmatpush1.bf16.msra.mxu0 0
    %1834 = vmatprep.subr.bf16.mxu0 0
    %1835 = vmatpush1.bf16.msra.mxu0 0
    %1836 = vmatprep.subr.bf16.mxu0 0
    %1837 = vmatpush1.bf16.msra.mxu0 0
    %1838 = vmatprep.subr.bf16.mxu0 0
    %1839 = vmatpush1.bf16.msra.mxu0 0
    %1840 = vmatprep.subr.bf16.mxu0 0
    %1841 = vmatpush1.bf16.msra.mxu0 0
    %1842 = vmatprep.subr.bf16.mxu0 0
    %1843 = vmatpush1.bf16.msra.mxu0 0
    %1844 = vmatprep.subr.bf16.mxu0 0
    %1845 = vmatpush1.bf16.msra.mxu0 0
    %1846 = vmatprep.mubr.bf16.mxu0 0
    %1847 = vmatmul.mubr.bf16.gmra.mrb[0].mxu0 %v1809
    %v1848 = vpop.f32.mrb[0].mxu0
    %v1849 = vadd.f32 %v1806, %v1848
    %v1850 = vpop.f32.mrb[0].mxu0
    %v1851 = vpop.f32.mrb[0].mxu0
    %v1852 = vpop.f32.mrb[0].mxu0
    %1853 = vdwg.mxu0
    %v1854 = vmax.f32 %v1849, 0.0
    %v1855 = vpack.c.bf16 %v1854, %v1854
    %v1856 = vld [vmem:[#allocation2 + $0x138] sm:$0x1]
    %v1857 = vld [vmem:[%s2 + $0xd0] sm:$0x3]
    %1859 = vset.pattern.permute.xlu0 0
    %1860 = vperm.xlu0 %1859, %v1857
    %v1861 = vpop.permute.xlu0 %1860
    %vm1863 = vcmask 64512
    %v1865 = vsel %vm1863, %v1856, 0
    %v1868 = vsel %vm149, %v1855, 0
    %1870 = vmatprep.subr.bf16.mxu0 0
    %1871 = vmatpush1.bf16.msra.mxu0 %v1868
    %1872 = vmatprep.subr.bf16.mxu0 0
    %1873 = vmatpush1.bf16.msra.mxu0 0
    %1874 = vmatprep.subr.bf16.mxu0 0
    %1875 = vmatpush1.bf16.msra.mxu0 0
    %1876 = vmatprep.subr.bf16.mxu0 0
    %1877 = vmatpush1.bf16.msra.mxu0 0
    %1878 = vmatprep.subr.bf16.mxu0 0
    %1879 = vmatpush1.bf16.msra.mxu0 0
    %1880 = vmatprep.subr.bf16.mxu0 0
    %1881 = vmatpush1.bf16.msra.mxu0 0
    %1882 = vmatprep.subr.bf16.mxu0 0
    %1883 = vmatpush1.bf16.msra.mxu0 0
    %1884 = vmatprep.subr.bf16.mxu0 0
    %1885 = vmatpush1.bf16.msra.mxu0 0
    %1886 = vmatprep.subr.bf16.mxu0 0
    %1887 = vmatpush1.bf16.msra.mxu0 0
    %1888 = vmatprep.subr.bf16.mxu0 0
    %1889 = vmatpush1.bf16.msra.mxu0 0
    %1890 = vmatprep.subr.bf16.mxu0 0
    %1891 = vmatpush1.bf16.msra.mxu0 0
    %1892 = vmatprep.subr.bf16.mxu0 0
    %1893 = vmatpush1.bf16.msra.mxu0 0
    %1894 = vmatprep.subr.bf16.mxu0 0
    %1895 = vmatpush1.bf16.msra.mxu0 0
    %1896 = vmatprep.subr.bf16.mxu0 0
    %1897 = vmatpush1.bf16.msra.mxu0 0
    %1898 = vmatprep.subr.bf16.mxu0 0
    %1899 = vmatpush1.bf16.msra.mxu0 0
    %1900 = vmatprep.subr.bf16.mxu0 0
    %1901 = vmatpush1.bf16.msra.mxu0 0
    %1902 = vmatprep.mubr.bf16.mxu0 0
    %1903 = vmatmul.mubr.bf16.gmra.mrb[0].mxu0 %v1865
    %v1904 = vpop.f32.mrb[0].mxu0
    %v1905 = vadd.f32 %v1861, %v1904
    %v1906 = vpop.f32.mrb[0].mxu0
    %v1907 = vpop.f32.mrb[0].mxu0
    %v1908 = vpop.f32.mrb[0].mxu0
    %1909 = vdwg.mxu0
    %vm1910 = vcmask 386048
    %1911 = vst.msk [vmem:[%s3] sm:$0x3] %vm1910, %v1905
    // Predicated region
    $region18: #{forward.1} parent=1 // pred_check
      _
    $region19: #{forward.1} parent=1 // pred_check_branch
      %1913 = sbr.rel (0) target = $region21
    $region20: #{forward.1} parent=1 // pred_region
      _
    $region21: #{forward.1} parent=1 // pred_fallthru
      _
    // Predicated region
    $region22: #{forward.1} parent=1 // pred_check
      _
    $region23: #{forward.1} parent=1 // pred_check_branch
      %1915 = sbr.rel (0) target = $region25
    $region24: #{forward.1} parent=1 // pred_region
      _
    $region25: #{forward.1} parent=1 // pred_fallthru
      _
    %1916 = vsyncpa [#allocation3], 1

</llo_original>
